<compile_context>
chip_gen: v7x
topology: tpu7x:2x2x1
jax: 0.10.0
libtpu: 0.0.40
codegen_flags: <defaults>
</compile_context>

<pallas_src>
import jax
import jax.numpy as jnp
from jax.experimental import pallas as pl
from jax.experimental.pallas import tpu as pltpu

_VMEM_LIMIT = 16 * 1024 * 1024  # per-step footprint at tile=1024 is ~6-9 MiB


def _round_up(x, m):
    return (x + m - 1) // m * m


def _row_tiling(m, max_tile=1024):
    """Row tile (multiple of 8, <= max_tile) and padded row count (multiple of tile).
    Whenever there is more than one minimal tile of work, cap the tile at half the
    rows so the grid has >= 2 steps (lets 'parallel' shard across v7x's 2 TCs)."""
    mp = _round_up(m, 8)
    if mp <= 16:
        return mp, mp
    tile = min(max_tile, _round_up((mp + 1) // 2, 8))
    return tile, _round_up(mp, tile)


# ---------------- Pallas kernels ----------------

def _conv_pool_relu_kernel(x_ref, w_ref, b_ref, o_ref):
    # One block-diagonal matmul covering all 4 pool offsets (o-major output columns),
    # then max over the 4 contiguous N-chunks, +bias, ReLU. Epilogue in f32.
    s = jnp.dot(x_ref[...], w_ref[...], preferred_element_type=jnp.float32)
    n = o_ref.shape[1]
    m = jnp.maximum(jnp.maximum(s[:, 0 * n:1 * n], s[:, 1 * n:2 * n]),
                    jnp.maximum(s[:, 2 * n:3 * n], s[:, 3 * n:4 * n]))
    o_ref[...] = jnp.maximum(m + b_ref[...], 0.0).astype(o_ref.dtype)


def _fc_head_kernel(x_ref, w1_ref, b1_ref, w2_ref, b2_ref, o_ref):
    # Fused fc1 + ReLU + fc2 (padded to 128 lane-dense columns) + log_softmax.
    h = jnp.dot(x_ref[...], w1_ref[...],
                preferred_element_type=jnp.float32) + b1_ref[...]
    h = jnp.maximum(h, 0.0).astype(jnp.bfloat16)
    logits = jnp.dot(h, w2_ref[...],
                     preferred_element_type=jnp.float32) + b2_ref[...]
    z = logits - jnp.max(logits, axis=-1, keepdims=True)
    lse = jnp.log(jnp.sum(jnp.exp(z), axis=-1, keepdims=True))
    o_ref[...] = z - lse


# ---------------- wrappers ----------------

def conv_pool_relu(slab, w_bd, bias, tile):
    """slab: (Mp, K) bf16 (rows already padded to a multiple of `tile`).
    w_bd: (K, 4*N) block-diagonal weight. Returns relu(max_o(conv)+bias): (Mp, N)."""
    mp, k = slab.shape
    n4 = w_bd.shape[1]
    n = n4 // 4
    return pl.pallas_call(
        _conv_pool_relu_kernel,
        out_shape=jax.ShapeDtypeStruct((mp, n), jnp.bfloat16),
        grid=(mp // tile,),
        in_specs=[
            pl.BlockSpec((tile, k), lambda i: (i, 0)),
            pl.BlockSpec((k, n4), lambda i: (0, 0)),
            pl.BlockSpec((1, n), lambda i: (0, 0)),
        ],
        out_specs=pl.BlockSpec((tile, n), lambda i: (i, 0)),
        compiler_params=pltpu.CompilerParams(
            dimension_semantics=("parallel",),
            vmem_limit_bytes=_VMEM_LIMIT),
        cost_estimate=pl.CostEstimate(
            flops=2 * mp * k * n4,
            transcendentals=0,
            bytes_accessed=(mp * k + k * n4) * 2 + n * 4 + mp * n * 2),
    )(slab, w_bd, bias)


def fc_head(x, w1, b1, w2, b2, max_tile=1024):
    """log_softmax(relu(x @ w1 + b1) @ w2 + b2), batch-row tiled, 128 output lanes."""
    bsz, k = x.shape
    h = w1.shape[1]
    n = w2.shape[1]
    tile, bp = _row_tiling(bsz, max_tile)
    if bp != bsz:
        x = jnp.pad(x, ((0, bp - bsz), (0, 0)))
    out = pl.pallas_call(
        _fc_head_kernel,
        out_shape=jax.ShapeDtypeStruct((bp, n), jnp.float32),
        grid=(bp // tile,),
        in_specs=[
            pl.BlockSpec((tile, k), lambda i: (i, 0)),
            pl.BlockSpec((k, h), lambda i: (0, 0)),
            pl.BlockSpec((1, h), lambda i: (0, 0)),
            pl.BlockSpec((h, n), lambda i: (0, 0)),
            pl.BlockSpec((1, n), lambda i: (0, 0)),
        ],
        out_specs=pl.BlockSpec((tile, n), lambda i: (i, 0)),
        compiler_params=pltpu.CompilerParams(
            dimension_semantics=("parallel",),
            vmem_limit_bytes=_VMEM_LIMIT),
        cost_estimate=pl.CostEstimate(
            flops=2 * bp * k * h + 2 * bp * h * n,
            transcendentals=bp * (n + 1),
            bytes_accessed=(bp * k + k * h + h * n) * 2 + (h + n) * 4 + bp * n * 4),
    )(x.astype(jnp.bfloat16), w1, b1, w2, b2)
    return out[:bsz]


def pool_im2col(act_nhwc, k, p_out, q_out):
    """Single im2col slab with all 4 pool offsets along K.
    Column order: ((dy*2+dx)*k*k + kh*k + kw)*C + c  (matches the block-diag weights).
    slab[(b,p,q), ...] = act[b, 2p+dy+kh, 2q+dx+kw, c]."""
    bsz = act_nhwc.shape[0]
    c = act_nhwc.shape[-1]
    cols = []
    for dy in range(2):
        for dx in range(2):
            for kh in range(k):
                for kw in range(k):
                    r0 = dy + kh
                    c0 = dx + kw
                    cols.append(act_nhwc[:, r0:r0 + 2 * (p_out - 1) + 1:2,
                                            c0:c0 + 2 * (q_out - 1) + 1:2, :])
    slab = jnp.concatenate(cols, axis=-1)                     # (B, P, Q, 4*k*k*C)
    return slab.reshape(bsz * p_out * q_out, 4 * k * k * c).astype(jnp.bfloat16)


def conv1_block(x_nhwc, w1g, b1g, max_tile=1024):
    """conv1 + maxpool2 + relu. Rows grouped by 4 so the matmul is (tile,144)@(144,512)
    and the store is a full 128-lane write; ungrouping is a free row-major reshape."""
    bsz = x_nhwc.shape[0]
    slab = pool_im2col(x_nhwc, 3, 13, 13)                     # (B*169, 36)
    m1 = slab.shape[0]
    mg = pl.cdiv(m1, 4)
    tile, mgp = _row_tiling(mg, max_tile)
    rows_needed = mgp * 4
    if rows_needed != m1:
        slab = jnp.pad(slab, ((0, rows_needed - m1), (0, 0)))
    slab_g = slab.reshape(mgp, 4 * 36)                        # (Mg, 144)
    out = conv_pool_relu(slab_g, w1g, b1g, tile)              # (Mg, 128) bf16
    y1 = out.reshape(mgp * 4, 32)[:m1]                        # free ungroup
    return y1.reshape(bsz, 13, 13, 32)


def conv2_block(y1_nhwc, w2bd, b2r, max_tile=1024):
    """conv2 + maxpool2 (floor) + relu via one (tile,1152)@(1152,256) block-diag matmul."""
    bsz = y1_nhwc.shape[0]
    slab = pool_im2col(y1_nhwc, 3, 5, 5)                      # (B*25, 1152)
    m2 = slab.shape[0]
    tile, m2p = _row_tiling(m2, max_tile)
    if m2p != m2:
        slab = jnp.pad(slab, ((0, m2p - m2), (0, 0)))
    out = conv_pool_relu(slab, w2bd, b2r, tile)               # (M2p, 64) bf16
    return out[:m2]                                           # (B*25, 64)


def prepare_params(torch_params):
    """One-time weight reorder: im2col layout, block-diagonal pool-offset expansion
    (o-major output columns), conv1 4-row grouping, NHWC fc1 column permute, fc2
    padded to 128 lane-dense columns. All matmul weights in bf16."""
    w1, b1, w2, b2, wf1, bf1, wf2, bf2 = torch_params
    # conv weights: (out, in, kh, kw) -> (kh, kw, in, out) -> (k*k*in, out)
    w1m = jnp.transpose(w1, (2, 3, 1, 0)).reshape(9, 32)
    w2m = jnp.transpose(w2, (2, 3, 1, 0)).reshape(288, 64)
    # conv1: 4-row grouped block-diagonal weight (144, 512); cols = o*128 + s*32 + ch.
    w1g = jnp.zeros((4 * 36, 4 * 128), jnp.float32)
    for s in range(4):
        for o in range(4):
            w1g = w1g.at[s * 36 + o * 9: s * 36 + o * 9 + 9,
                         o * 128 + s * 32: o * 128 + s * 32 + 32].set(w1m)
    b1g = jnp.tile(b1.reshape(1, 32), (1, 4)).astype(jnp.float32)     # (1, 128)
    # conv2: plain block-diagonal weight (1152, 256); cols = o*64 + ch.
    w2bd = jnp.zeros((4 * 288, 4 * 64), jnp.float32)
    for o in range(4):
        w2bd = w2bd.at[o * 288:(o + 1) * 288, o * 64:(o + 1) * 64].set(w2m)
    b2r = b2.reshape(1, 64).astype(jnp.float32)
    # fc1: torch columns are NCHW-flat (c,h,w); our activations are NHWC-flat (h,w,c).
    wf1p = (wf1.reshape(128, 64, 5, 5).transpose(0, 2, 3, 1)
                .reshape(128, 64 * 5 * 5).T.astype(jnp.bfloat16))     # (1600, 128)
    bf1p = bf1.reshape(1, 128).astype(jnp.float32)
    # fc2 padded to 128 output columns: zero weights + bias -1e9 on dummy columns
    # leaves log_softmax of the first 10 columns unchanged.
    wf2p = jnp.zeros((128, 128), jnp.float32).at[:, :10].set(wf2.T).astype(jnp.bfloat16)
    bf2p = jnp.full((1, 128), -1e9, jnp.float32).at[0, :10].set(bf2)
    return (w1g.astype(jnp.bfloat16), b1g, w2bd.astype(jnp.bfloat16), b2r,
            wf1p, bf1p, wf2p, bf2p)


def net_forward(prepared_params, x_nchw):
    w1g, b1g, w2bd, b2r, wf1, bf1, wf2, bf2 = prepared_params
    bsz = x_nchw.shape[0]
    # C_in = 1 so NCHW -> NHWC is a pure reshape (no data movement).
    x = x_nchw.reshape(bsz, 28, 28, 1).astype(jnp.bfloat16)
    y1 = conv1_block(x, w1g, b1g)                  # (B, 13, 13, 32) bf16
    y2 = conv2_block(y1, w2bd, b2r)                # (B*25, 64) bf16
    flat = y2.reshape(bsz, 64 * 5 * 5)             # NHWC flatten (wf1 cols pre-permuted)
    logp = fc_head(flat, wf1, bf1, wf2, bf2)       # (B, 128) f32
    return logp[:, :10]


def init_params(key):
    """PyTorch-layout parameters with torch-default uniform init."""
    ks = jax.random.split(key, 8)

    def u(k, shape, fan_in):
        bound = 1.0 / jnp.sqrt(jnp.float32(fan_in))
        return jax.random.uniform(k, shape, jnp.float32, -bound, bound)

    w1 = u(ks[0], (32, 1, 3, 3), 1 * 9)
    b1 = u(ks[1], (32,), 1 * 9)
    w2 = u(ks[2], (64, 32, 3, 3), 32 * 9)
    b2 = u(ks[3], (64,), 32 * 9)
    wf1 = u(ks[4], (128, 64 * 5 * 5), 64 * 5 * 5)
    bf1 = u(ks[5], (128,), 64 * 5 * 5)
    wf2 = u(ks[6], (10, 128), 128)
    bf2 = u(ks[7], (10,), 128)
    return (w1, b1, w2, b2, wf1, bf1, wf2, bf2)


if __name__ == "__main__":
    key = jax.random.PRNGKey(0)
    kp, kx = jax.random.split(key)
    params = init_params(kp)
    prepared = prepare_params(params)          # one-time weight reorder (not per forward)
    # batch=2, MNIST-like 1x28x28 input (required by fc1 = 64*5*5)
    x = jax.random.normal(kx, (2, 1, 28, 28), jnp.float32)
    out = jax.jit(net_forward)(prepared, x)
    out = jax.block_until_ready(out)
    assert out.shape == (2, 10)
    assert bool(jnp.all(jnp.isfinite(out)))
    print("KERNEL_OK")
</pallas_src>

<mosaic_0001>
module attributes {stable_mosaic.version = 11 : i64} {
  func.func @_conv_pool_relu_kernel(%arg0: i32, %arg1: memref<48x144xbf16, #tpu.memory_space<vmem>>, %arg2: memref<144x512xbf16, #tpu.memory_space<vmem>>, %arg3: memref<1x128xf32, #tpu.memory_space<vmem>>, %arg4: memref<48x128xbf16, #tpu.memory_space<vmem>>) attributes {dimension_semantics = [#tpu.dimension_semantics<parallel>], iteration_bounds = array<i64: 2>, scalar_prefetch = 0 : i64, scratch_operands = 0 : i64, tpu.core_type = #tpu.core_type<tc>, window_params = [{transform_indices = @transform_0, window_bounds = array<i64: 48, 144>}, {pipeline_mode = #tpu.pipeline_mode<synchronous>, transform_indices = @transform_1, window_bounds = array<i64: 144, 512>}, {pipeline_mode = #tpu.pipeline_mode<synchronous>, transform_indices = @transform_2, window_bounds = array<i64: 1, 128>}, {transform_indices = @transform_3, window_bounds = array<i64: 48, 128>}]} {
    %c0 = arith.constant 0 : index
    %c0_0 = arith.constant 0 : index
    %0 = vector.load %arg1[%c0, %c0_0] : memref<48x144xbf16, #tpu.memory_space<vmem>>, vector<48x144xbf16>
    %c0_1 = arith.constant 0 : index
    %c0_2 = arith.constant 0 : index
    %1 = vector.load %arg2[%c0_1, %c0_2] : memref<144x512xbf16, #tpu.memory_space<vmem>>, vector<144x512xbf16>
    %cst = arith.constant dense<0.000000e+00> : vector<48x512xf32>
    %2 = tpu.matmul %0, %1, %cst {dimension_numbers = #tpu.dot_dimension_numbers<[1], [0], [0], [1], [0, 0, 1, 1], [], []>} : vector<48x144xbf16>, vector<144x512xbf16>, vector<48x512xf32> -> vector<48x512xf32>
    %3 = vector.extract_strided_slice %2 {offsets = [0, 0], sizes = [48, 128], strides = [1, 1]} : vector<48x512xf32> to vector<48x128xf32>
    %4 = vector.extract_strided_slice %2 {offsets = [0, 128], sizes = [48, 128], strides = [1, 1]} : vector<48x512xf32> to vector<48x128xf32>
    %5 = arith.maximumf %3, %4 : vector<48x128xf32>
    %6 = vector.extract_strided_slice %2 {offsets = [0, 256], sizes = [48, 128], strides = [1, 1]} : vector<48x512xf32> to vector<48x128xf32>
    %7 = vector.extract_strided_slice %2 {offsets = [0, 384], sizes = [48, 128], strides = [1, 1]} : vector<48x512xf32> to vector<48x128xf32>
    %8 = arith.maximumf %6, %7 : vector<48x128xf32>
    %9 = arith.maximumf %5, %8 : vector<48x128xf32>
    %c0_3 = arith.constant 0 : index
    %c0_4 = arith.constant 0 : index
    %10 = vector.load %arg3[%c0_3, %c0_4] : memref<1x128xf32, #tpu.memory_space<vmem>>, vector<1x128xf32>
    %11 = vector.broadcast %10 : vector<1x128xf32> to vector<48x128xf32>
    %12 = arith.addf %9, %11 : vector<48x128xf32>
    %cst_5 = arith.constant 0.000000e+00 : f32
    %13 = vector.broadcast %cst_5 : f32 to vector<48x128xf32>
    %14 = arith.maximumf %12, %13 : vector<48x128xf32>
    %15 = arith.truncf %14 : vector<48x128xf32> to vector<48x128xbf16>
    %c0_6 = arith.constant 0 : index
    %c0_7 = arith.constant 0 : index
    %16 = vector.load %arg4[%c0_6, %c0_7] : memref<48x128xbf16, #tpu.memory_space<vmem>>, vector<48x128xbf16>
    tpu.vector_store %arg4[%c0_6, %c0_7], %15 {strides = array<i32>} : memref<48x128xbf16, #tpu.memory_space<vmem>>, vector<48x128xbf16>,
    return
  }
  func.func @transform_0(%arg0: i32) -> (i32, i32) {
    %c0_i32 = arith.constant 0 : i32
    %c0_i32_0 = arith.constant 0 : i32
    return %arg0, %c0_i32 : i32, i32
  }
  func.func @transform_1(%arg0: i32) -> (i32, i32) {
    %c0_i32 = arith.constant 0 : i32
    %c0_i32_0 = arith.constant 0 : i32
    %c0_i32_1 = arith.constant 0 : i32
    return %c0_i32, %c0_i32_0 : i32, i32
  }
  func.func @transform_2(%arg0: i32) -> (i32, i32) {
    %c0_i32 = arith.constant 0 : i32
    %c0_i32_0 = arith.constant 0 : i32
    %c0_i32_1 = arith.constant 0 : i32
    return %c0_i32, %c0_i32_0 : i32, i32
  }
  func.func @transform_3(%arg0: i32) -> (i32, i32) {
    %c0_i32 = arith.constant 0 : i32
    %c0_i32_0 = arith.constant 0 : i32
    return %arg0, %c0_i32 : i32, i32
  }
}

module attributes {stable_mosaic.version = 11 : i64} {
  func.func @_conv_pool_relu_kernel(%arg0: i32, %arg1: memref<32x1152xbf16, #tpu.memory_space<vmem>>, %arg2: memref<1152x256xbf16, #tpu.memory_space<vmem>>, %arg3: memref<1x64xf32, #tpu.memory_space<vmem>>, %arg4: memref<32x64xbf16, #tpu.memory_space<vmem>>) attributes {dimension_semantics = [#tpu.dimension_semantics<parallel>], iteration_bounds = array<i64: 2>, scalar_prefetch = 0 : i64, scratch_operands = 0 : i64, tpu.core_type = #tpu.core_type<tc>, window_params = [{transform_indices = @transform_0, window_bounds = array<i64: 32, 1152>}, {pipeline_mode = #tpu.pipeline_mode<synchronous>, transform_indices = @transform_1, window_bounds = array<i64: 1152, 256>}, {pipeline_mode = #tpu.pipeline_mode<synchronous>, transform_indices = @transform_2, window_bounds = array<i64: 1, 64>}, {transform_indices = @transform_3, window_bounds = array<i64: 32, 64>}]} {
    %c0 = arith.constant 0 : index
    %c0_0 = arith.constant 0 : index
    %0 = vector.load %arg1[%c0, %c0_0] : memref<32x1152xbf16, #tpu.memory_space<vmem>>, vector<32x1152xbf16>
    %c0_1 = arith.constant 0 : index
    %c0_2 = arith.constant 0 : index
    %1 = vector.load %arg2[%c0_1, %c0_2] : memref<1152x256xbf16, #tpu.memory_space<vmem>>, vector<1152x256xbf16>
    %cst = arith.constant dense<0.000000e+00> : vector<32x256xf32>
    %2 = tpu.matmul %0, %1, %cst {dimension_numbers = #tpu.dot_dimension_numbers<[1], [0], [0], [1], [0, 0, 1, 1], [], []>} : vector<32x1152xbf16>, vector<1152x256xbf16>, vector<32x256xf32> -> vector<32x256xf32>
    %3 = vector.extract_strided_slice %2 {offsets = [0, 0], sizes = [32, 64], strides = [1, 1]} : vector<32x256xf32> to vector<32x64xf32>
    %4 = vector.extract_strided_slice %2 {offsets = [0, 64], sizes = [32, 64], strides = [1, 1]} : vector<32x256xf32> to vector<32x64xf32>
    %5 = arith.maximumf %3, %4 : vector<32x64xf32>
    %6 = vector.extract_strided_slice %2 {offsets = [0, 128], sizes = [32, 64], strides = [1, 1]} : vector<32x256xf32> to vector<32x64xf32>
    %7 = vector.extract_strided_slice %2 {offsets = [0, 192], sizes = [32, 64], strides = [1, 1]} : vector<32x256xf32> to vector<32x64xf32>
    %8 = arith.maximumf %6, %7 : vector<32x64xf32>
    %9 = arith.maximumf %5, %8 : vector<32x64xf32>
    %c0_3 = arith.constant 0 : index
    %c0_4 = arith.constant 0 : index
    %10 = vector.load %arg3[%c0_3, %c0_4] : memref<1x64xf32, #tpu.memory_space<vmem>>, vector<1x64xf32>
    %11 = vector.broadcast %10 : vector<1x64xf32> to vector<32x64xf32>
    %12 = arith.addf %9, %11 : vector<32x64xf32>
    %cst_5 = arith.constant 0.000000e+00 : f32
    %13 = vector.broadcast %cst_5 : f32 to vector<32x64xf32>
    %14 = arith.maximumf %12, %13 : vector<32x64xf32>
    %15 = arith.truncf %14 : vector<32x64xf32> to vector<32x64xbf16>
    %c0_6 = arith.constant 0 : index
    %c0_7 = arith.constant 0 : index
    %16 = vector.load %arg4[%c0_6, %c0_7] : memref<32x64xbf16, #tpu.memory_space<vmem>>, vector<32x64xbf16>
    tpu.vector_store %arg4[%c0_6, %c0_7], %15 {strides = array<i32>} : memref<32x64xbf16, #tpu.memory_space<vmem>>, vector<32x64xbf16>,
    return
  }
  func.func @transform_0(%arg0: i32) -> (i32, i32) {
    %c0_i32 = arith.constant 0 : i32
    %c0_i32_0 = arith.constant 0 : i32
    return %arg0, %c0_i32 : i32, i32
  }
  func.func @transform_1(%arg0: i32) -> (i32, i32) {
    %c0_i32 = arith.constant 0 : i32
    %c0_i32_0 = arith.constant 0 : i32
    %c0_i32_1 = arith.constant 0 : i32
    return %c0_i32, %c0_i32_0 : i32, i32
  }
  func.func @transform_2(%arg0: i32) -> (i32, i32) {
    %c0_i32 = arith.constant 0 : i32
    %c0_i32_0 = arith.constant 0 : i32
    %c0_i32_1 = arith.constant 0 : i32
    return %c0_i32, %c0_i32_0 : i32, i32
  }
  func.func @transform_3(%arg0: i32) -> (i32, i32) {
    %c0_i32 = arith.constant 0 : i32
    %c0_i32_0 = arith.constant 0 : i32
    return %arg0, %c0_i32 : i32, i32
  }
}

module attributes {stable_mosaic.version = 11 : i64} {
  func.func @_fc_head_kernel(%arg0: i32, %arg1: memref<8x1600xbf16, #tpu.memory_space<vmem>>, %arg2: memref<1600x128xbf16, #tpu.memory_space<vmem>>, %arg3: memref<1x128xf32, #tpu.memory_space<vmem>>, %arg4: memref<128x128xbf16, #tpu.memory_space<vmem>>, %arg5: memref<1x128xf32, #tpu.memory_space<vmem>>, %arg6: memref<8x128xf32, #tpu.memory_space<vmem>>) attributes {dimension_semantics = [#tpu.dimension_semantics<parallel>], iteration_bounds = array<i64: 1>, scalar_prefetch = 0 : i64, scratch_operands = 0 : i64, tpu.core_type = #tpu.core_type<tc>, window_params = [{transform_indices = @transform_0, window_bounds = array<i64: 8, 1600>}, {pipeline_mode = #tpu.pipeline_mode<synchronous>, transform_indices = @transform_1, window_bounds = array<i64: 1600, 128>}, {pipeline_mode = #tpu.pipeline_mode<synchronous>, transform_indices = @transform_2, window_bounds = array<i64: 1, 128>}, {pipeline_mode = #tpu.pipeline_mode<synchronous>, transform_indices = @transform_3, window_bounds = array<i64: 128, 128>}, {pipeline_mode = #tpu.pipeline_mode<synchronous>, transform_indices = @transform_4, window_bounds = array<i64: 1, 128>}, {transform_indices = @transform_5, window_bounds = array<i64: 8, 128>}]} {
    %c0 = arith.constant 0 : index
    %c0_0 = arith.constant 0 : index
    %0 = vector.load %arg1[%c0, %c0_0] : memref<8x1600xbf16, #tpu.memory_space<vmem>>, vector<8x1600xbf16>
    %c0_1 = arith.constant 0 : index
    %c0_2 = arith.constant 0 : index
    %1 = vector.load %arg2[%c0_1, %c0_2] : memref<1600x128xbf16, #tpu.memory_space<vmem>>, vector<1600x128xbf16>
    %cst = arith.constant dense<0.000000e+00> : vector<8x128xf32>
    %2 = tpu.matmul %0, %1, %cst {dimension_numbers = #tpu.dot_dimension_numbers<[1], [0], [0], [1], [0, 0, 1, 1], [], []>} : vector<8x1600xbf16>, vector<1600x128xbf16>, vector<8x128xf32> -> vector<8x128xf32>
    %c0_3 = arith.constant 0 : index
    %c0_4 = arith.constant 0 : index
    %3 = vector.load %arg3[%c0_3, %c0_4] : memref<1x128xf32, #tpu.memory_space<vmem>>, vector<1x128xf32>
    %4 = vector.broadcast %3 : vector<1x128xf32> to vector<8x128xf32>
    %5 = arith.addf %2, %4 : vector<8x128xf32>
    %cst_5 = arith.constant 0.000000e+00 : f32
    %6 = vector.broadcast %cst_5 : f32 to vector<8x128xf32>
    %7 = arith.maximumf %5, %6 : vector<8x128xf32>
    %8 = arith.truncf %7 : vector<8x128xf32> to vector<8x128xbf16>
    %c0_6 = arith.constant 0 : index
    %c0_7 = arith.constant 0 : index
    %9 = vector.load %arg4[%c0_6, %c0_7] : memref<128x128xbf16, #tpu.memory_space<vmem>>, vector<128x128xbf16>
    %cst_8 = arith.constant dense<0.000000e+00> : vector<8x128xf32>
    %10 = tpu.matmul %8, %9, %cst_8 {dimension_numbers = #tpu.dot_dimension_numbers<[1], [0], [0], [1], [0, 0, 1, 1], [], []>} : vector<8x128xbf16>, vector<128x128xbf16>, vector<8x128xf32> -> vector<8x128xf32>
    %c0_9 = arith.constant 0 : index
    %c0_10 = arith.constant 0 : index
    %11 = vector.load %arg5[%c0_9, %c0_10] : memref<1x128xf32, #tpu.memory_space<vmem>>, vector<1x128xf32>
    %12 = vector.broadcast %11 : vector<1x128xf32> to vector<8x128xf32>
    %13 = arith.addf %10, %12 : vector<8x128xf32>
    %cst_11 = arith.constant dense<0xFF800000> : vector<8xf32>
    %14 = vector.multi_reduction <maximumf>, %13, %cst_11 [1] : vector<8x128xf32> to vector<8xf32>
    %15 = vector.shape_cast %14 : vector<8xf32> to vector<8x1xf32>
    %16 = vector.broadcast %15 : vector<8x1xf32> to vector<8x128xf32>
    %17 = arith.subf %13, %16 : vector<8x128xf32>
    %18 = math.exp %17 : vector<8x128xf32>
    %cst_12 = arith.constant dense<0.000000e+00> : vector<8xf32>
    %19 = vector.multi_reduction <add>, %18, %cst_12 [1] : vector<8x128xf32> to vector<8xf32>
    %20 = vector.shape_cast %19 : vector<8xf32> to vector<8x1xf32>
    %21 = math.log %20 : vector<8x1xf32>
    %22 = vector.broadcast %21 : vector<8x1xf32> to vector<8x128xf32>
    %23 = arith.subf %17, %22 : vector<8x128xf32>
    %c0_13 = arith.constant 0 : index
    %c0_14 = arith.constant 0 : index
    %24 = vector.load %arg6[%c0_13, %c0_14] : memref<8x128xf32, #tpu.memory_space<vmem>>, vector<8x128xf32>
    tpu.vector_store %arg6[%c0_13, %c0_14], %23 {strides = array<i32>} : memref<8x128xf32, #tpu.memory_space<vmem>>, vector<8x128xf32>,
    return
  }
  func.func @transform_0(%arg0: i32) -> (i32, i32) {
    %c0_i32 = arith.constant 0 : i32
    %c0_i32_0 = arith.constant 0 : i32
    return %arg0, %c0_i32 : i32, i32
  }
  func.func @transform_1(%arg0: i32) -> (i32, i32) {
    %c0_i32 = arith.constant 0 : i32
    %c0_i32_0 = arith.constant 0 : i32
    %c0_i32_1 = arith.constant 0 : i32
    return %c0_i32, %c0_i32_0 : i32, i32
  }
  func.func @transform_2(%arg0: i32) -> (i32, i32) {
    %c0_i32 = arith.constant 0 : i32
    %c0_i32_0 = arith.constant 0 : i32
    %c0_i32_1 = arith.constant 0 : i32
    return %c0_i32, %c0_i32_0 : i32, i32
  }
  func.func @transform_3(%arg0: i32) -> (i32, i32) {
    %c0_i32 = arith.constant 0 : i32
    %c0_i32_0 = arith.constant 0 : i32
    %c0_i32_1 = arith.constant 0 : i32
    return %c0_i32, %c0_i32_0 : i32, i32
  }
  func.func @transform_4(%arg0: i32) -> (i32, i32) {
    %c0_i32 = arith.constant 0 : i32
    %c0_i32_0 = arith.constant 0 : i32
    %c0_i32_1 = arith.constant 0 : i32
    return %c0_i32, %c0_i32_0 : i32, i32
  }
  func.func @transform_5(%arg0: i32) -> (i32, i32) {
    %c0_i32 = arith.constant 0 : i32
    %c0_i32_0 = arith.constant 0 : i32
    return %arg0, %c0_i32 : i32, i32
  }
}

</mosaic_0001>

<llo_original>
// kernel: net_forward.3
$region0: #{net_forward.3}
  #allocation0 [shape = 'u32[]', space=smem, size = 0x4, offset = 0x4, fixed_abs, tag = 'smem constant byte address 0x4 - core index']
  #allocation1 [shape = 'u32[144,128]{1,0:T(1,128)}', space=vmem, size = 0x12000, scoped, tag = 'internal scratch']
  %s0 = inlined_call_operand.vmem [shape: bf16[96,144], index: 0, kind: input, shape index: {}]
  %s1 = inlined_call_operand.vmem [shape: bf16[144,512], index: 1, kind: input, shape index: {}]
  %s2 = inlined_call_operand.vmem [shape: f32[1,128], index: 2, kind: input, shape index: {}]
  %s3 = inlined_call_operand.vmem [shape: bf16[96,128], index: 3, kind: output, shape index: {}]
  %s4 = sld [smem:[#allocation0]]
  $region45: #{net_forward.3} parent=0
    _
  %s6 = ssub.s32 1, %s4
  %s7 = scalar_select 0, %s6, %s4
  loop: start=0, step=1, limit=4
  $region2: #{net_forward.3} parent=0 // loop_pre_header
    _
  $region3: #{net_forward.3} parent=0 // loop_header
    %s9 = sphi 0, %s13
    %p10 = scmp.ge.s32.totalorder %s9, 4
    %s19 = sphi 0, %s21
    %s22 = sphi 0, %s19
    %s23 = sphi 0, %s22
    %s39 = sphi 0, %s23
    %s43 = sphi 0, %s43
    %s45 = sphi 0, %s43
    %s46 = sphi 0, %s45
    %s60 = sphi 0, %s46
    %s64 = sphi 0, %s64
    %s66 = sphi 0, %s64
    %s67 = sphi 0, %s66
    %s81 = sphi 0, %s67
    %s87 = sphi 0, %s89
    %s90 = sphi 0, %s87
    %s91 = sphi 0, %s90
    %s107 = sphi 0, %s91
  $region4: #{net_forward.3} parent=0 // loop_header_branch
    %12 = sbr.rel (%p10) target = $region8
  $region5: #{net_forward.3} parent=0 // loop_body
    %s14 = ssub.s32 %s9, 1
    %s15 = ssub.s32 %s9, 2
    %s16 = sadd.s32 %s9, 1
    %s17 = ssub.s32 %s9, %s16
    %p18 = scmp.eq.s32.totalorder %s17, 0
    %s20 = sadd.s32 %s19, 1
    %s21 = scalar_select %p18, %s19, %s20
    %p24 = pneg %p18
    %p25 = scmp.eq.s32.totalorder %s9, 1
    %p26 = por %p24, %p25
    %p27 = scmp.ne.s32.totalorder %s19, %s22
    %p28 = scmp.eq.s32.totalorder %s9, 0
    %p29 = por %p27, %p28
    %p30 = scmp.ne.s32.totalorder %s19, %s22
    %p31 = scmp.eq.s32.totalorder %s14, 1
    %p32 = por %p30, %p31
    %p33 = scmp.ne.s32.totalorder %s22, %s23
    %p34 = scmp.eq.s32.totalorder %s14, 0
    %p35 = por %p33, %p34
    %p36 = scmp.ne.s32.totalorder %s22, %s23
    %p37 = scmp.eq.s32.totalorder %s15, 1
    %p38 = por %p36, %p37
    %p40 = scmp.ne.s32.totalorder %s23, %s39
    %p41 = scmp.eq.s32.totalorder %s15, 0
    %p42 = por %p40, %p41
    %s44 = sadd.s32 %s43, 1
    %p47 = scmp.eq.s32.totalorder %s9, 1
    %p48 = scmp.ne.s32.totalorder %s43, %s45
    %p49 = scmp.eq.s32.totalorder %s9, 0
    %p50 = por %p48, %p49
    %p51 = scmp.ne.s32.totalorder %s43, %s45
    %p52 = scmp.eq.s32.totalorder %s14, 1
    %p53 = por %p51, %p52
    %p54 = scmp.ne.s32.totalorder %s45, %s46
    %p55 = scmp.eq.s32.totalorder %s14, 0
    %p56 = por %p54, %p55
    %p57 = scmp.ne.s32.totalorder %s45, %s46
    %p58 = scmp.eq.s32.totalorder %s15, 1
    %p59 = por %p57, %p58
    %p61 = scmp.ne.s32.totalorder %s46, %s60
    %p62 = scmp.eq.s32.totalorder %s15, 0
    %p63 = por %p61, %p62
    %s65 = sadd.s32 %s64, 1
    %p68 = scmp.eq.s32.totalorder %s9, 1
    %p69 = scmp.ne.s32.totalorder %s64, %s66
    %p70 = scmp.eq.s32.totalorder %s9, 0
    %p71 = por %p69, %p70
    %p72 = scmp.ne.s32.totalorder %s64, %s66
    %p73 = scmp.eq.s32.totalorder %s14, 1
    %p74 = por %p72, %p73
    %p75 = scmp.ne.s32.totalorder %s66, %s67
    %p76 = scmp.eq.s32.totalorder %s14, 0
    %p77 = por %p75, %p76
    %p78 = scmp.ne.s32.totalorder %s66, %s67
    %p79 = scmp.eq.s32.totalorder %s15, 1
    %p80 = por %p78, %p79
    %p82 = scmp.ne.s32.totalorder %s67, %s81
    %p83 = scmp.eq.s32.totalorder %s15, 0
    %p84 = por %p82, %p83
    %s85 = ssub.s32 %s9, %s16
    %p86 = scmp.eq.s32.totalorder %s85, 0
    %s88 = sadd.s32 %s87, 1
    %s89 = scalar_select %p86, %s87, %s88
    %p92 = pneg %p86
    %p93 = scmp.eq.s32.totalorder %s9, 1
    %p94 = por %p92, %p93
    %p95 = scmp.ne.s32.totalorder %s87, %s90
    %p96 = scmp.eq.s32.totalorder %s9, 0
    %p97 = por %p95, %p96
    %p98 = scmp.ne.s32.totalorder %s87, %s90
    %p99 = scmp.eq.s32.totalorder %s14, 1
    %p100 = por %p98, %p99
    %p101 = scmp.ne.s32.totalorder %s90, %s91
    %p102 = scmp.eq.s32.totalorder %s14, 0
    %p103 = por %p101, %p102
    %p104 = scmp.ne.s32.totalorder %s90, %s91
    %p105 = scmp.eq.s32.totalorder %s15, 1
    %p106 = por %p104, %p105
    %p108 = scmp.ne.s32.totalorder %s91, %s107
    %p109 = scmp.eq.s32.totalorder %s15, 0
    %p110 = por %p108, %p109
    %p111 = scmp.le.s32.totalorder 1, %s9
    %p112 = scmp.lt.s32.totalorder %s9, 3
    %p113 = pnand %p111, %p112
    %p114 = pneg %p113
    // Predicated region
    $region9: #{net_forward.3} parent=5 // pred_check
      _
    $region10: #{net_forward.3} parent=5 // pred_check_branch
      %116 = sbr.rel (%p113) target = $region12
    $region11: #{net_forward.3} parent=5 // pred_region
      %s117 = ssub.s32 %s9, 1
      // Predicated region
      $region13: #{net_forward.3} parent=11 // pred_check
        %p118 = pneg %p56
      $region14: #{net_forward.3} parent=11 // pred_check_branch
        %120 = sbr.rel (%p118) target = $region16
      $region15: #{net_forward.3} parent=11 // pred_region
        _
      $region16: #{net_forward.3} parent=11 // pred_fallthru
        _
      // Predicated region
      $region17: #{net_forward.3} parent=11 // pred_check
        %p121 = pneg %p77
      $region18: #{net_forward.3} parent=11 // pred_check_branch
        %123 = sbr.rel (%p121) target = $region20
      $region19: #{net_forward.3} parent=11 // pred_region
        _
      $region20: #{net_forward.3} parent=11 // pred_fallthru
        _
    $region12: #{net_forward.3} parent=5 // pred_fallthru
      _
    %p124 = scmp.lt.s32.totalorder %s9, 2
    // Predicated region
    $region21: #{net_forward.3} parent=5 // pred_check
      %p125 = pneg %p124
    $region22: #{net_forward.3} parent=5 // pred_check_branch
      %127 = sbr.rel (%p125) target = $region24
    $region23: #{net_forward.3} parent=5 // pred_region
      // Predicated region
      $region25: #{net_forward.3} parent=23 // pred_check
        %p128 = pneg %p29
      $region26: #{net_forward.3} parent=23 // pred_check_branch
        %130 = sbr.rel (%p128) target = $region28
      $region27: #{net_forward.3} parent=23 // pred_region
        %s131 = smul.u32 6, %s9
        %p132 = scmp.lt.s32.totalorder %s131, 11
        %s133 = scalar_select %p132, %s131, 11
        %s134 = smul.addr %s133, 2
        %s135 = smul.addr %s134, 4
        %s136 = scalar_lea.vmem %s0, %s135
        %s137 = smul.u32 6, %s9
      $region28: #{net_forward.3} parent=23 // pred_fallthru
        _
    $region24: #{net_forward.3} parent=5 // pred_fallthru
      _
    %p138 = scmp.le.s32.totalorder 1, %s9
    %p139 = scmp.lt.s32.totalorder %s9, 3
    %p140 = pnand %p138, %p139
    %p141 = pneg %p140
    // Predicated region
    $region29: #{net_forward.3} parent=5 // pred_check
      _
    $region30: #{net_forward.3} parent=5 // pred_check_branch
      %143 = sbr.rel (%p140) target = $region32
    $region31: #{net_forward.3} parent=5 // pred_region
      %s144 = ssub.s32 %s9, 1
      %s145 = smul.u32 6, %s14
      %p146 = scmp.lt.s32.totalorder %s145, 11
      %s147 = scalar_select %p146, %s145, 11
      %s148 = smul.addr %s147, 2
      %s149 = smul.addr %s148, 4
      %s150 = scalar_lea.vmem %s0, %s149
      %p151 = pneg %p35
      %p152 = pneg %p32
      %p153 = pneg %p56
      %p154 = pneg %p53
      %p155 = pneg %p77
      %p156 = pneg %p74
      %p157 = pneg %p103
      %p158 = pneg %p100
      %s159 = smul.u32 6, %s14
      %p160 = scmp.lt.s32.totalorder %s159, 11
      %s161 = scalar_select %p160, %s159, 11
      %s162 = smul.addr %s161, 4
      %s163 = scalar_lea.vmem %s3, %s162
      %s164 = smul.u32 6, %s14
      %p165 = scmp.lt.s32.totalorder %s164, 11
      %s166 = scalar_select %p165, %s164, 11
      %s167 = smul.addr %s166, 2
      %s168 = smul.addr %s167, 4
      %s169 = scalar_lea.vmem %s0, %s168
      %s170 = smul.u32 6, %s14
      %s171 = smul.u32 6, %s14
      %p172 = scmp.lt.s32.totalorder %s171, 11
      %s173 = scalar_select %p172, %s171, 11
      %s174 = smul.addr %s173, 4
      %s175 = scalar_lea.vmem %s3, %s174
      %s176 = smul.u32 6, %s14
      %v178 = vld [vmem:[%s169] sm:$0xff]
      %v179 = vld [vmem:[%s169 + $0x8] sm:$0xff]
      %v180 = vld [vmem:[%s169 + $0x10] sm:$0xff]
      %v181 = vld [vmem:[%s169 + $0x18] sm:$0xff]
      %v182 = vld [vmem:[%s169 + $0x20] sm:$0xff]
      %v183 = vld [vmem:[%s169 + $0x28] sm:$0xff]
      %v184 = vld [vmem:[%s1] sm:$0xff]
      %v185 = vld [vmem:[%s1 + $0x8] sm:$0xff]
      %v186 = vld [vmem:[%s1 + $0x10] sm:$0xff]
      %v187 = vld [vmem:[%s1 + $0x18] sm:$0xff]
      %v188 = vld [vmem:[%s1 + $0x20] sm:$0xff]
      %v189 = vld [vmem:[%s1 + $0x28] sm:$0xff]
      %v190 = vld [vmem:[%s1 + $0x30] sm:$0xff]
      %v191 = vld [vmem:[%s1 + $0x38] sm:$0xff]
      %v192 = vld [vmem:[%s1 + $0x40] sm:$0xff]
      %v193 = vld [vmem:[%s1 + $0x48] sm:$0xff]
      %v194 = vld [vmem:[%s1 + $0x50] sm:$0xff]
      %v195 = vld [vmem:[%s1 + $0x58] sm:$0xff]
      %v196 = vld [vmem:[%s1 + $0x60] sm:$0xff]
      %v197 = vld [vmem:[%s1 + $0x68] sm:$0xff]
      %v198 = vld [vmem:[%s1 + $0x70] sm:$0xff]
      %v199 = vld [vmem:[%s1 + $0x78] sm:$0xff]
      %v200 = vld [vmem:[%s1 + $0x80] sm:$0xff]
      %v201 = vld [vmem:[%s1 + $0x88] sm:$0xff]
      %v202 = vld [vmem:[%s1 + $0x90] sm:$0xff]
      %v203 = vld [vmem:[%s1 + $0x98] sm:$0xff]
      %v204 = vld [vmem:[%s1 + $0xa0] sm:$0xff]
      %v205 = vld [vmem:[%s1 + $0xa8] sm:$0xff]
      %v206 = vld [vmem:[%s1 + $0xb0] sm:$0xff]
      %v207 = vld [vmem:[%s1 + $0xb8] sm:$0xff]
      %v208 = vld [vmem:[%s1 + $0xc0] sm:$0xff]
      %v209 = vld [vmem:[%s1 + $0xc8] sm:$0xff]
      %v210 = vld [vmem:[%s1 + $0xd0] sm:$0xff]
      %v211 = vld [vmem:[%s1 + $0xd8] sm:$0xff]
      %v212 = vld [vmem:[%s1 + $0xe0] sm:$0xff]
      %v213 = vld [vmem:[%s1 + $0xe8] sm:$0xff]
      %v214 = vld [vmem:[%s1 + $0xf0] sm:$0xff]
      %v215 = vld [vmem:[%s1 + $0xf8] sm:$0xff]
      %v216 = vld [vmem:[%s1 + $0x100] sm:$0xff]
      %v217 = vld [vmem:[%s1 + $0x108] sm:$0xff]
      %v218 = vld [vmem:[%s1 + $0x110] sm:$0xff]
      %v219 = vld [vmem:[%s1 + $0x118] sm:$0xff]
      %v226 = vunpack.c.l.b16 %v178
      %v227 = vunpack.c.h.b16 %v178
      %v228 = vunpack.c.l.b16 %v179
      %v229 = vunpack.c.h.b16 %v179
      %v230 = vunpack.c.l.b16 %v180
      %v231 = vunpack.c.h.b16 %v180
      %v232 = vunpack.c.l.b16 %v181
      %v233 = vunpack.c.h.b16 %v181
      %v234 = vunpack.c.l.b16 %v182
      %v235 = vunpack.c.h.b16 %v182
      %v236 = vunpack.c.l.b16 %v183
      %v237 = vunpack.c.h.b16 %v183
      %v238 = vpack.c.b16 %v228, %v226
      %v239 = vpack.c.b16 %v229, %v227
      %v240 = vpack.c.b16 %v232, %v230
      %v241 = vpack.c.b16 %v233, %v231
      %v242 = vpack.c.b16 %v236, %v234
      %v243 = vpack.c.b16 %v237, %v235
      %v283 = vunpack.c.l.b16 %v184
      %v284 = vunpack.c.h.b16 %v184
      %v285 = vunpack.c.l.b16 %v185
      %v286 = vunpack.c.h.b16 %v185
      %v287 = vunpack.c.l.b16 %v186
      %v288 = vunpack.c.h.b16 %v186
      %v289 = vunpack.c.l.b16 %v187
      %v290 = vunpack.c.h.b16 %v187
      %v291 = vunpack.c.l.b16 %v188
      %v292 = vunpack.c.h.b16 %v188
      %v293 = vunpack.c.l.b16 %v189
      %v294 = vunpack.c.h.b16 %v189
      %v295 = vunpack.c.l.b16 %v190
      %v296 = vunpack.c.h.b16 %v190
      %v297 = vunpack.c.l.b16 %v191
      %v298 = vunpack.c.h.b16 %v191
      %v299 = vunpack.c.l.b16 %v192
      %v300 = vunpack.c.h.b16 %v192
      %v301 = vunpack.c.l.b16 %v193
      %v302 = vunpack.c.h.b16 %v193
      %v303 = vunpack.c.l.b16 %v194
      %v304 = vunpack.c.h.b16 %v194
      %v305 = vunpack.c.l.b16 %v195
      %v306 = vunpack.c.h.b16 %v195
      %v307 = vunpack.c.l.b16 %v196
      %v308 = vunpack.c.h.b16 %v196
      %v309 = vunpack.c.l.b16 %v197
      %v310 = vunpack.c.h.b16 %v197
      %v311 = vunpack.c.l.b16 %v198
      %v312 = vunpack.c.h.b16 %v198
      %v313 = vunpack.c.l.b16 %v199
      %v314 = vunpack.c.h.b16 %v199
      %v315 = vunpack.c.l.b16 %v200
      %v316 = vunpack.c.h.b16 %v200
      %v317 = vunpack.c.l.b16 %v201
      %v318 = vunpack.c.h.b16 %v201
      %v319 = vunpack.c.l.b16 %v202
      %v320 = vunpack.c.h.b16 %v202
      %v321 = vunpack.c.l.b16 %v203
      %v322 = vunpack.c.h.b16 %v203
      %v323 = vunpack.c.l.b16 %v204
      %v324 = vunpack.c.h.b16 %v204
      %v325 = vunpack.c.l.b16 %v205
      %v326 = vunpack.c.h.b16 %v205
      %v327 = vunpack.c.l.b16 %v206
      %v328 = vunpack.c.h.b16 %v206
      %v329 = vunpack.c.l.b16 %v207
      %v330 = vunpack.c.h.b16 %v207
      %v331 = vunpack.c.l.b16 %v208
      %v332 = vunpack.c.h.b16 %v208
      %v333 = vunpack.c.l.b16 %v209
      %v334 = vunpack.c.h.b16 %v209
      %v335 = vunpack.c.l.b16 %v210
      %v336 = vunpack.c.h.b16 %v210
      %v337 = vunpack.c.l.b16 %v211
      %v338 = vunpack.c.h.b16 %v211
      %v339 = vunpack.c.l.b16 %v212
      %v340 = vunpack.c.h.b16 %v212
      %v341 = vunpack.c.l.b16 %v213
      %v342 = vunpack.c.h.b16 %v213
      %v343 = vunpack.c.l.b16 %v214
      %v344 = vunpack.c.h.b16 %v214
      %v345 = vunpack.c.l.b16 %v215
      %v346 = vunpack.c.h.b16 %v215
      %v347 = vunpack.c.l.b16 %v216
      %v348 = vunpack.c.h.b16 %v216
      %v349 = vunpack.c.l.b16 %v217
      %v350 = vunpack.c.h.b16 %v217
      %v351 = vunpack.c.l.b16 %v218
      %v352 = vunpack.c.h.b16 %v218
      %v353 = vunpack.c.l.b16 %v219
      %v354 = vunpack.c.h.b16 %v219
      %v355 = vpack.c.b16 %v287, %v283
      %v356 = vpack.c.b16 %v288, %v284
      %v357 = vpack.c.b16 %v289, %v285
      %v358 = vpack.c.b16 %v290, %v286
      %v359 = vpack.c.b16 %v295, %v291
      %v360 = vpack.c.b16 %v296, %v292
      %v361 = vpack.c.b16 %v297, %v293
      %v362 = vpack.c.b16 %v298, %v294
      %v363 = vpack.c.b16 %v303, %v299
      %v364 = vpack.c.b16 %v304, %v300
      %v365 = vpack.c.b16 %v305, %v301
      %v366 = vpack.c.b16 %v306, %v302
      %v367 = vpack.c.b16 %v311, %v307
      %v368 = vpack.c.b16 %v312, %v308
      %v369 = vpack.c.b16 %v313, %v309
      %v370 = vpack.c.b16 %v314, %v310
      %v371 = vpack.c.b16 %v319, %v315
      %v372 = vpack.c.b16 %v320, %v316
      %v373 = vpack.c.b16 %v321, %v317
      %v374 = vpack.c.b16 %v322, %v318
      %v375 = vpack.c.b16 %v327, %v323
      %v376 = vpack.c.b16 %v328, %v324
      %v377 = vpack.c.b16 %v329, %v325
      %v378 = vpack.c.b16 %v330, %v326
      %v379 = vpack.c.b16 %v335, %v331
      %v380 = vpack.c.b16 %v336, %v332
      %v381 = vpack.c.b16 %v337, %v333
      %v382 = vpack.c.b16 %v338, %v334
      %v383 = vpack.c.b16 %v343, %v339
      %v384 = vpack.c.b16 %v344, %v340
      %v385 = vpack.c.b16 %v345, %v341
      %v386 = vpack.c.b16 %v346, %v342
      %v387 = vpack.c.b16 %v351, %v347
      %v388 = vpack.c.b16 %v352, %v348
      %v389 = vpack.c.b16 %v353, %v349
      %v390 = vpack.c.b16 %v354, %v350
      %vm427 = vcmask 130048
      %v429 = vsel %vm427, %v239, 0
      %v432 = vsel %vm427, %v241, 0
      %v435 = vsel %vm427, %v243, 0
      %437 = vmatprep.subr.bf16.mxu0 %v356
      %438 = vmatpush1.bf16.msra.mxu0 %v355
      %439 = vmatprep.subr.bf16.mxu0 %v360
      %440 = vmatpush1.bf16.msra.mxu0 %v359
      %441 = vmatprep.subr.bf16.mxu0 %v364
      %442 = vmatpush1.bf16.msra.mxu0 %v363
      %443 = vmatprep.subr.bf16.mxu0 %v368
      %444 = vmatpush1.bf16.msra.mxu0 %v367
      %445 = vmatprep.subr.bf16.mxu0 %v372
      %446 = vmatpush1.bf16.msra.mxu0 %v371
      %447 = vmatprep.subr.bf16.mxu0 %v376
      %448 = vmatpush1.bf16.msra.mxu0 %v375
      %449 = vmatprep.subr.bf16.mxu0 %v380
      %450 = vmatpush1.bf16.msra.mxu0 %v379
      %451 = vmatprep.subr.bf16.mxu0 %v384
      %452 = vmatpush1.bf16.msra.mxu0 %v383
      %453 = vmatprep.subr.bf16.mxu0 %v388
      %454 = vmatpush1.bf16.msra.mxu0 %v387
      %455 = vmatprep.subr.bf16.mxu0 0
      %456 = vmatpush1.bf16.msra.mxu0 0
      %457 = vmatprep.subr.bf16.mxu0 0
      %458 = vmatpush1.bf16.msra.mxu0 0
      %459 = vmatprep.subr.bf16.mxu0 0
      %460 = vmatpush1.bf16.msra.mxu0 0
      %461 = vmatprep.subr.bf16.mxu0 0
      %462 = vmatpush1.bf16.msra.mxu0 0
      %463 = vmatprep.subr.bf16.mxu0 0
      %464 = vmatpush1.bf16.msra.mxu0 0
      %465 = vmatprep.subr.bf16.mxu0 0
      %466 = vmatpush1.bf16.msra.mxu0 0
      %467 = vmatprep.subr.bf16.mxu0 0
      %468 = vmatpush1.bf16.msra.mxu0 0
      %469 = vmatprep.mubr.bf16.mxu0 %v429
      %470 = vmatmul.mubr.bf16.gmra.mrb[0].mxu0 %v238
      %v471 = vpop.f32.mrb[0].mxu0
      %v472 = vadd.f32 0.0, %v471
      %v473 = vpop.f32.mrb[0].mxu0
      %v474 = vadd.f32 0.0, %v473
      %v475 = vpop.f32.mrb[0].mxu0
      %v476 = vadd.f32 0.0, %v475
      %v477 = vpop.f32.mrb[0].mxu0
      %v478 = vadd.f32 0.0, %v477
      %479 = vmatprep.mubr.bf16.mxu0 %v432
      %480 = vmatmul.mubr.bf16.gmra.mrb[0].mxu0 %v240
      %v481 = vpop.f32.mrb[0].mxu0
      %v482 = vadd.f32 0.0, %v481
      %v483 = vpop.f32.mrb[0].mxu0
      %v484 = vadd.f32 0.0, %v483
      %v485 = vpop.f32.mrb[0].mxu0
      %v486 = vadd.f32 0.0, %v485
      %v487 = vpop.f32.mrb[0].mxu0
      %v488 = vadd.f32 0.0, %v487
      %489 = vmatprep.mubr.bf16.mxu0 %v435
      %490 = vmatmul.mubr.bf16.gmra.mrb[0].mxu0 %v242
      %v491 = vpop.f32.mrb[0].mxu0
      %v492 = vadd.f32 0.0, %v491
      %v493 = vpop.f32.mrb[0].mxu0
      %v494 = vadd.f32 0.0, %v493
      %v495 = vpop.f32.mrb[0].mxu0
      %v496 = vadd.f32 0.0, %v495
      %v497 = vpop.f32.mrb[0].mxu0
      %v498 = vadd.f32 0.0, %v497
      %499 = vdwg.mxu0
      %500 = vmatprep.subr.bf16.mxu0 %v358
      %501 = vmatpush1.bf16.msra.mxu0 %v357
      %502 = vmatprep.subr.bf16.mxu0 %v362
      %503 = vmatpush1.bf16.msra.mxu0 %v361
      %504 = vmatprep.subr.bf16.mxu0 %v366
      %505 = vmatpush1.bf16.msra.mxu0 %v365
      %506 = vmatprep.subr.bf16.mxu0 %v370
      %507 = vmatpush1.bf16.msra.mxu0 %v369
      %508 = vmatprep.subr.bf16.mxu0 %v374
      %509 = vmatpush1.bf16.msra.mxu0 %v373
      %510 = vmatprep.subr.bf16.mxu0 %v378
      %511 = vmatpush1.bf16.msra.mxu0 %v377
      %512 = vmatprep.subr.bf16.mxu0 %v382
      %513 = vmatpush1.bf16.msra.mxu0 %v381
      %514 = vmatprep.subr.bf16.mxu0 %v386
      %515 = vmatpush1.bf16.msra.mxu0 %v385
      %516 = vmatprep.subr.bf16.mxu0 %v390
      %517 = vmatpush1.bf16.msra.mxu0 %v389
      %518 = vmatprep.subr.bf16.mxu0 0
      %519 = vmatpush1.bf16.msra.mxu0 0
      %520 = vmatprep.subr.bf16.mxu0 0
      %521 = vmatpush1.bf16.msra.mxu0 0
      %522 = vmatprep.subr.bf16.mxu0 0
      %523 = vmatpush1.bf16.msra.mxu0 0
      %524 = vmatprep.subr.bf16.mxu0 0
      %525 = vmatpush1.bf16.msra.mxu0 0
      %526 = vmatprep.subr.bf16.mxu0 0
      %527 = vmatpush1.bf16.msra.mxu0 0
      %528 = vmatprep.subr.bf16.mxu0 0
      %529 = vmatpush1.bf16.msra.mxu0 0
      %530 = vmatprep.subr.bf16.mxu0 0
      %531 = vmatpush1.bf16.msra.mxu0 0
      %532 = vmatprep.mubr.bf16.mxu0 %v429
      %533 = vmatmul.mubr.bf16.gmra.mrb[0].mxu0 %v238
      %v534 = vpop.f32.mrb[0].mxu0
      %v535 = vadd.f32 0.0, %v534
      %v536 = vpop.f32.mrb[0].mxu0
      %v537 = vadd.f32 0.0, %v536
      %v538 = vpop.f32.mrb[0].mxu0
      %v539 = vadd.f32 0.0, %v538
      %v540 = vpop.f32.mrb[0].mxu0
      %v541 = vadd.f32 0.0, %v540
      %542 = vmatprep.mubr.bf16.mxu0 %v432
      %543 = vmatmul.mubr.bf16.gmra.mrb[0].mxu0 %v240
      %v544 = vpop.f32.mrb[0].mxu0
      %v545 = vadd.f32 0.0, %v544
      %v546 = vpop.f32.mrb[0].mxu0
      %v547 = vadd.f32 0.0, %v546
      %v548 = vpop.f32.mrb[0].mxu0
      %v549 = vadd.f32 0.0, %v548
      %v550 = vpop.f32.mrb[0].mxu0
      %v551 = vadd.f32 0.0, %v550
      %552 = vmatprep.mubr.bf16.mxu0 %v435
      %553 = vmatmul.mubr.bf16.gmra.mrb[0].mxu0 %v242
      %v554 = vpop.f32.mrb[0].mxu0
      %v555 = vadd.f32 0.0, %v554
      %v556 = vpop.f32.mrb[0].mxu0
      %v557 = vadd.f32 0.0, %v556
      %v558 = vpop.f32.mrb[0].mxu0
      %v559 = vadd.f32 0.0, %v558
      %v560 = vpop.f32.mrb[0].mxu0
      %v561 = vadd.f32 0.0, %v560
      %562 = vdwg.mxu0
      %v563 = vmax.f32 %v472, %v474
      %v564 = vmax.f32 %v476, %v478
      %v565 = vmax.f32 %v482, %v484
      %v566 = vmax.f32 %v486, %v488
      %v567 = vmax.f32 %v492, %v494
      %v568 = vmax.f32 %v496, %v498
      %v569 = vmax.f32 %v535, %v537
      %v570 = vmax.f32 %v539, %v541
      %v571 = vmax.f32 %v545, %v547
      %v572 = vmax.f32 %v549, %v551
      %v573 = vmax.f32 %v555, %v557
      %v574 = vmax.f32 %v559, %v561
      %v575 = vmax.f32 %v563, %v569
      %v576 = vmax.f32 %v564, %v570
      %v577 = vmax.f32 %v565, %v571
      %v578 = vmax.f32 %v566, %v572
      %v579 = vmax.f32 %v567, %v573
      %v580 = vmax.f32 %v568, %v574
      %v581 = vld [vmem:[%s2] sm:$0x1]
      %v583 = vlaneseq
      %v584 = vshrl.u32 %v583, 7
      %v585 = vsub.s32 0, %v584
      %v586 = vrot.slane %v581, %v585
      %v588 = vadd.f32 %v575, %v586
      %v589 = vadd.f32 %v576, %v586
      %v590 = vadd.f32 %v577, %v586
      %v591 = vadd.f32 %v578, %v586
      %v592 = vadd.f32 %v579, %v586
      %v593 = vadd.f32 %v580, %v586
      %v594 = vmax.f32 %v588, 0.0
      %v595 = vmax.f32 %v589, 0.0
      %v596 = vmax.f32 %v590, 0.0
      %v597 = vmax.f32 %v591, 0.0
      %v598 = vmax.f32 %v592, 0.0
      %v599 = vmax.f32 %v593, 0.0
      %v600 = vpack.c.bf16 %v595, %v594
      %v601 = vpack.c.bf16 %v597, %v596
      %v602 = vpack.c.bf16 %v599, %v598
      %v606 = vunpack.c.l.b16 %v600
      %v607 = vunpack.c.h.b16 %v600
      %v608 = vunpack.c.l.b16 %v601
      %v609 = vunpack.c.h.b16 %v601
      %v610 = vunpack.c.l.b16 %v602
      %v611 = vunpack.c.h.b16 %v602
      %v612 = vpack.c.b16 %v606, %v606
      %v613 = vpack.c.b16 %v607, %v607
      %v614 = vpack.c.b16 %v608, %v608
      %v615 = vpack.c.b16 %v609, %v609
      %v616 = vpack.c.b16 %v610, %v610
      %v617 = vpack.c.b16 %v611, %v611
      %624 = vst [vmem:[%s175] sm:$0xf] %v612
      %625 = vst [vmem:[%s175 + $0x4] sm:$0xf] %v613
      %626 = vst [vmem:[%s175 + $0x8] sm:$0xf] %v614
      %627 = vst [vmem:[%s175 + $0xc] sm:$0xf] %v615
      %628 = vst [vmem:[%s175 + $0x10] sm:$0xf] %v616
      %629 = vst [vmem:[%s175 + $0x14] sm:$0xf] %v617
      %s630 = smul.u32 6, %s14
      %p631 = scmp.lt.s32.totalorder %s630, 11
      %s632 = scalar_select %p631, %s630, 11
      %s633 = smul.addr %s632, 4
      %s634 = scalar_lea.vmem %s3, %s633
      // Predicated region
      $region33: #{net_forward.3} parent=31 // pred_check
        %p635 = pneg %p100
      $region34: #{net_forward.3} parent=31 // pred_check_branch
        %637 = sbr.rel (%p635) target = $region36
      $region35: #{net_forward.3} parent=31 // pred_region
        %s638 = smul.u32 6, %s14
      $region36: #{net_forward.3} parent=31 // pred_fallthru
        _
    $region32: #{net_forward.3} parent=5 // pred_fallthru
      _
    %p639 = scmp.le.s32.totalorder 2, %s9
    // Predicated region
    $region37: #{net_forward.3} parent=5 // pred_check
      %p640 = pneg %p639
    $region38: #{net_forward.3} parent=5 // pred_check_branch
      %642 = sbr.rel (%p640) target = $region40
    $region39: #{net_forward.3} parent=5 // pred_region
      %s643 = ssub.s32 %s9, 2
      // Predicated region
      $region41: #{net_forward.3} parent=39 // pred_check
        %p644 = pneg %p106
      $region42: #{net_forward.3} parent=39 // pred_check_branch
        %646 = sbr.rel (%p644) target = $region44
      $region43: #{net_forward.3} parent=39 // pred_region
        %s647 = smul.u32 6, %s15
        %p648 = scmp.lt.s32.totalorder %s647, 11
        %s649 = scalar_select %p648, %s647, 11
        %s650 = smul.addr %s649, 4
        %s651 = scalar_lea.vmem %s3, %s650
      $region44: #{net_forward.3} parent=39 // pred_fallthru
        _
    $region40: #{net_forward.3} parent=5 // pred_fallthru
      _
  $region6: #{net_forward.3} parent=0 // loop_footer
    %s13 = sadd.s32 1, %s9
  $region7: #{net_forward.3} parent=0 // loop_footer_branch
    %8 = sbr.rel target = $region3
  $region8: #{net_forward.3} parent=0 // loop_exit
    _

// kernel: net_forward.4
$region0: #{net_forward.4}
  #allocation0 [shape = 'u32[]', space=smem, size = 0x4, offset = 0x4, fixed_abs, tag = 'smem constant byte address 0x4 - core index']
  #allocation1 [shape = 'u32[144,128]{1,0:T(1,128)}', space=vmem, size = 0x12000, scoped, tag = 'internal scratch']
  %s0 = inlined_call_operand.vmem [shape: bf16[64,1152], index: 0, kind: input, shape index: {}]
  %s1 = inlined_call_operand.vmem [shape: bf16[1152,256], index: 1, kind: input, shape index: {}]
  %s2 = inlined_call_operand.vmem [shape: f32[1,64], index: 2, kind: input, shape index: {}]
  %s3 = inlined_call_operand.vmem [shape: bf16[64,64], index: 3, kind: output, shape index: {}]
  %s4 = sld [smem:[#allocation0]]
  $region45: #{net_forward.4} parent=0
    _
  %s6 = ssub.s32 1, %s4
  %s7 = scalar_select 0, %s6, %s4
  loop: start=0, step=1, limit=4
  $region2: #{net_forward.4} parent=0 // loop_pre_header
    _
  $region3: #{net_forward.4} parent=0 // loop_header
    %s9 = sphi 0, %s13
    %p10 = scmp.ge.s32.totalorder %s9, 4
    %s19 = sphi 0, %s21
    %s22 = sphi 0, %s19
    %s23 = sphi 0, %s22
    %s39 = sphi 0, %s23
    %s43 = sphi 0, %s43
    %s45 = sphi 0, %s43
    %s46 = sphi 0, %s45
    %s60 = sphi 0, %s46
    %s64 = sphi 0, %s64
    %s66 = sphi 0, %s64
    %s67 = sphi 0, %s66
    %s81 = sphi 0, %s67
    %s87 = sphi 0, %s89
    %s90 = sphi 0, %s87
    %s91 = sphi 0, %s90
    %s107 = sphi 0, %s91
  $region4: #{net_forward.4} parent=0 // loop_header_branch
    %12 = sbr.rel (%p10) target = $region8
  $region5: #{net_forward.4} parent=0 // loop_body
    %s14 = ssub.s32 %s9, 1
    %s15 = ssub.s32 %s9, 2
    %s16 = sadd.s32 %s9, 1
    %s17 = ssub.s32 %s9, %s16
    %p18 = scmp.eq.s32.totalorder %s17, 0
    %s20 = sadd.s32 %s19, 1
    %s21 = scalar_select %p18, %s19, %s20
    %p24 = pneg %p18
    %p25 = scmp.eq.s32.totalorder %s9, 1
    %p26 = por %p24, %p25
    %p27 = scmp.ne.s32.totalorder %s19, %s22
    %p28 = scmp.eq.s32.totalorder %s9, 0
    %p29 = por %p27, %p28
    %p30 = scmp.ne.s32.totalorder %s19, %s22
    %p31 = scmp.eq.s32.totalorder %s14, 1
    %p32 = por %p30, %p31
    %p33 = scmp.ne.s32.totalorder %s22, %s23
    %p34 = scmp.eq.s32.totalorder %s14, 0
    %p35 = por %p33, %p34
    %p36 = scmp.ne.s32.totalorder %s22, %s23
    %p37 = scmp.eq.s32.totalorder %s15, 1
    %p38 = por %p36, %p37
    %p40 = scmp.ne.s32.totalorder %s23, %s39
    %p41 = scmp.eq.s32.totalorder %s15, 0
    %p42 = por %p40, %p41
    %s44 = sadd.s32 %s43, 1
    %p47 = scmp.eq.s32.totalorder %s9, 1
    %p48 = scmp.ne.s32.totalorder %s43, %s45
    %p49 = scmp.eq.s32.totalorder %s9, 0
    %p50 = por %p48, %p49
    %p51 = scmp.ne.s32.totalorder %s43, %s45
    %p52 = scmp.eq.s32.totalorder %s14, 1
    %p53 = por %p51, %p52
    %p54 = scmp.ne.s32.totalorder %s45, %s46
    %p55 = scmp.eq.s32.totalorder %s14, 0
    %p56 = por %p54, %p55
    %p57 = scmp.ne.s32.totalorder %s45, %s46
    %p58 = scmp.eq.s32.totalorder %s15, 1
    %p59 = por %p57, %p58
    %p61 = scmp.ne.s32.totalorder %s46, %s60
    %p62 = scmp.eq.s32.totalorder %s15, 0
    %p63 = por %p61, %p62
    %s65 = sadd.s32 %s64, 1
    %p68 = scmp.eq.s32.totalorder %s9, 1
    %p69 = scmp.ne.s32.totalorder %s64, %s66
    %p70 = scmp.eq.s32.totalorder %s9, 0
    %p71 = por %p69, %p70
    %p72 = scmp.ne.s32.totalorder %s64, %s66
    %p73 = scmp.eq.s32.totalorder %s14, 1
    %p74 = por %p72, %p73
    %p75 = scmp.ne.s32.totalorder %s66, %s67
    %p76 = scmp.eq.s32.totalorder %s14, 0
    %p77 = por %p75, %p76
    %p78 = scmp.ne.s32.totalorder %s66, %s67
    %p79 = scmp.eq.s32.totalorder %s15, 1
    %p80 = por %p78, %p79
    %p82 = scmp.ne.s32.totalorder %s67, %s81
    %p83 = scmp.eq.s32.totalorder %s15, 0
    %p84 = por %p82, %p83
    %s85 = ssub.s32 %s9, %s16
    %p86 = scmp.eq.s32.totalorder %s85, 0
    %s88 = sadd.s32 %s87, 1
    %s89 = scalar_select %p86, %s87, %s88
    %p92 = pneg %p86
    %p93 = scmp.eq.s32.totalorder %s9, 1
    %p94 = por %p92, %p93
    %p95 = scmp.ne.s32.totalorder %s87, %s90
    %p96 = scmp.eq.s32.totalorder %s9, 0
    %p97 = por %p95, %p96
    %p98 = scmp.ne.s32.totalorder %s87, %s90
    %p99 = scmp.eq.s32.totalorder %s14, 1
    %p100 = por %p98, %p99
    %p101 = scmp.ne.s32.totalorder %s90, %s91
    %p102 = scmp.eq.s32.totalorder %s14, 0
    %p103 = por %p101, %p102
    %p104 = scmp.ne.s32.totalorder %s90, %s91
    %p105 = scmp.eq.s32.totalorder %s15, 1
    %p106 = por %p104, %p105
    %p108 = scmp.ne.s32.totalorder %s91, %s107
    %p109 = scmp.eq.s32.totalorder %s15, 0
    %p110 = por %p108, %p109
    %p111 = scmp.le.s32.totalorder 1, %s9
    %p112 = scmp.lt.s32.totalorder %s9, 3
    %p113 = pnand %p111, %p112
    %p114 = pneg %p113
    // Predicated region
    $region9: #{net_forward.4} parent=5 // pred_check
      _
    $region10: #{net_forward.4} parent=5 // pred_check_branch
      %116 = sbr.rel (%p113) target = $region12
    $region11: #{net_forward.4} parent=5 // pred_region
      %s117 = ssub.s32 %s9, 1
      // Predicated region
      $region13: #{net_forward.4} parent=11 // pred_check
        %p118 = pneg %p56
      $region14: #{net_forward.4} parent=11 // pred_check_branch
        %120 = sbr.rel (%p118) target = $region16
      $region15: #{net_forward.4} parent=11 // pred_region
        _
      $region16: #{net_forward.4} parent=11 // pred_fallthru
        _
      // Predicated region
      $region17: #{net_forward.4} parent=11 // pred_check
        %p121 = pneg %p77
      $region18: #{net_forward.4} parent=11 // pred_check_branch
        %123 = sbr.rel (%p121) target = $region20
      $region19: #{net_forward.4} parent=11 // pred_region
        _
      $region20: #{net_forward.4} parent=11 // pred_fallthru
        _
    $region12: #{net_forward.4} parent=5 // pred_fallthru
      _
    %p124 = scmp.lt.s32.totalorder %s9, 2
    // Predicated region
    $region21: #{net_forward.4} parent=5 // pred_check
      %p125 = pneg %p124
    $region22: #{net_forward.4} parent=5 // pred_check_branch
      %127 = sbr.rel (%p125) target = $region24
    $region23: #{net_forward.4} parent=5 // pred_region
      // Predicated region
      $region25: #{net_forward.4} parent=23 // pred_check
        %p128 = pneg %p29
      $region26: #{net_forward.4} parent=23 // pred_check_branch
        %130 = sbr.rel (%p128) target = $region28
      $region27: #{net_forward.4} parent=23 // pred_region
        %s131 = smul.u32 4, %s9
        %p132 = scmp.lt.s32.totalorder %s131, 7
        %s133 = scalar_select %p132, %s131, 7
        %s134 = smul.addr %s133, 9
        %s135 = smul.addr %s134, 4
        %s136 = scalar_lea.vmem %s0, %s135
        %s137 = smul.u32 4, %s9
      $region28: #{net_forward.4} parent=23 // pred_fallthru
        _
    $region24: #{net_forward.4} parent=5 // pred_fallthru
      _
    %p138 = scmp.le.s32.totalorder 1, %s9
    %p139 = scmp.lt.s32.totalorder %s9, 3
    %p140 = pnand %p138, %p139
    %p141 = pneg %p140
    // Predicated region
    $region29: #{net_forward.4} parent=5 // pred_check
      _
    $region30: #{net_forward.4} parent=5 // pred_check_branch
      %143 = sbr.rel (%p140) target = $region32
    $region31: #{net_forward.4} parent=5 // pred_region
      %s144 = ssub.s32 %s9, 1
      %s145 = smul.u32 4, %s14
      %p146 = scmp.lt.s32.totalorder %s145, 7
      %s147 = scalar_select %p146, %s145, 7
      %s148 = smul.addr %s147, 9
      %s149 = smul.addr %s148, 4
      %s150 = scalar_lea.vmem %s0, %s149
      %p151 = pneg %p35
      %p152 = pneg %p32
      %p153 = pneg %p56
      %p154 = pneg %p53
      %p155 = pneg %p77
      %p156 = pneg %p74
      %p157 = pneg %p103
      %p158 = pneg %p100
      %s159 = smul.u32 4, %s14
      %p160 = scmp.lt.s32.totalorder %s159, 7
      %s161 = scalar_select %p160, %s159, 7
      %s162 = smul.addr %s161, 4
      %s163 = scalar_lea.vmem %s3, %s162
      %s164 = smul.u32 4, %s14
      %p165 = scmp.lt.s32.totalorder %s164, 7
      %s166 = scalar_select %p165, %s164, 7
      %s167 = smul.addr %s166, 9
      %s168 = smul.addr %s167, 4
      %s169 = scalar_lea.vmem %s0, %s168
      %s170 = smul.u32 4, %s14
      %s171 = smul.u32 4, %s14
      %p172 = scmp.lt.s32.totalorder %s171, 7
      %s173 = scalar_select %p172, %s171, 7
      %s174 = smul.addr %s173, 4
      %s175 = scalar_lea.vmem %s3, %s174
      %s176 = smul.u32 4, %s14
      %v178 = vld [vmem:[%s169] sm:$0xff]
      %v179 = vld [vmem:[%s169 + $0x8] sm:$0xff]
      %v180 = vld [vmem:[%s169 + $0x10] sm:$0xff]
      %v181 = vld [vmem:[%s169 + $0x18] sm:$0xff]
      %v182 = vld [vmem:[%s169 + $0x20] sm:$0xf]
      %v183 = vld [vmem:[%s169 + $0x24] sm:$0xff]
      %v184 = vld [vmem:[%s169 + $0x2c] sm:$0xff]
      %v185 = vld [vmem:[%s169 + $0x34] sm:$0xff]
      %v186 = vld [vmem:[%s169 + $0x3c] sm:$0xff]
      %v187 = vld [vmem:[%s169 + $0x44] sm:$0xf]
      %v188 = vld [vmem:[%s169 + $0x48] sm:$0xff]
      %v189 = vld [vmem:[%s169 + $0x50] sm:$0xff]
      %v190 = vld [vmem:[%s169 + $0x58] sm:$0xff]
      %v191 = vld [vmem:[%s169 + $0x60] sm:$0xff]
      %v192 = vld [vmem:[%s169 + $0x68] sm:$0xf]
      %v193 = vld [vmem:[%s169 + $0x6c] sm:$0xff]
      %v194 = vld [vmem:[%s169 + $0x74] sm:$0xff]
      %v195 = vld [vmem:[%s169 + $0x7c] sm:$0xff]
      %v196 = vld [vmem:[%s169 + $0x84] sm:$0xff]
      %v197 = vld [vmem:[%s169 + $0x8c] sm:$0xf]
      %v198 = vld [vmem:[%s1] sm:$0xff]
      %v199 = vld [vmem:[%s1 + $0x8] sm:$0xff]
      %v200 = vld [vmem:[%s1 + $0x10] sm:$0xff]
      %v201 = vld [vmem:[%s1 + $0x18] sm:$0xff]
      %v202 = vld [vmem:[%s1 + $0x20] sm:$0xff]
      %v203 = vld [vmem:[%s1 + $0x28] sm:$0xff]
      %v204 = vld [vmem:[%s1 + $0x30] sm:$0xff]
      %v205 = vld [vmem:[%s1 + $0x38] sm:$0xff]
      %v206 = vld [vmem:[%s1 + $0x40] sm:$0xff]
      %v207 = vld [vmem:[%s1 + $0x48] sm:$0xff]
      %v208 = vld [vmem:[%s1 + $0x50] sm:$0xff]
      %v209 = vld [vmem:[%s1 + $0x58] sm:$0xff]
      %v210 = vld [vmem:[%s1 + $0x60] sm:$0xff]
      %v211 = vld [vmem:[%s1 + $0x68] sm:$0xff]
      %v212 = vld [vmem:[%s1 + $0x70] sm:$0xff]
      %v213 = vld [vmem:[%s1 + $0x78] sm:$0xff]
      %v214 = vld [vmem:[%s1 + $0x80] sm:$0xff]
      %v215 = vld [vmem:[%s1 + $0x88] sm:$0xff]
      %v216 = vld [vmem:[%s1 + $0x90] sm:$0xff]
      %v217 = vld [vmem:[%s1 + $0x98] sm:$0xff]
      %v218 = vld [vmem:[%s1 + $0xa0] sm:$0xff]
      %v219 = vld [vmem:[%s1 + $0xa8] sm:$0xff]
      %v220 = vld [vmem:[%s1 + $0xb0] sm:$0xff]
      %v221 = vld [vmem:[%s1 + $0xb8] sm:$0xff]
      %v222 = vld [vmem:[%s1 + $0xc0] sm:$0xff]
      %v223 = vld [vmem:[%s1 + $0xc8] sm:$0xff]
      %v224 = vld [vmem:[%s1 + $0xd0] sm:$0xff]
      %v225 = vld [vmem:[%s1 + $0xd8] sm:$0xff]
      %v226 = vld [vmem:[%s1 + $0xe0] sm:$0xff]
      %v227 = vld [vmem:[%s1 + $0xe8] sm:$0xff]
      %v228 = vld [vmem:[%s1 + $0xf0] sm:$0xff]
      %v229 = vld [vmem:[%s1 + $0xf8] sm:$0xff]
      %v230 = vld [vmem:[%s1 + $0x100] sm:$0xff]
      %v231 = vld [vmem:[%s1 + $0x108] sm:$0xff]
      %v232 = vld [vmem:[%s1 + $0x110] sm:$0xff]
      %v233 = vld [vmem:[%s1 + $0x118] sm:$0xff]
      %v234 = vld [vmem:[%s1 + $0x120] sm:$0xff]
      %v235 = vld [vmem:[%s1 + $0x128] sm:$0xff]
      %v236 = vld [vmem:[%s1 + $0x130] sm:$0xff]
      %v237 = vld [vmem:[%s1 + $0x138] sm:$0xff]
      %v238 = vld [vmem:[%s1 + $0x140] sm:$0xff]
      %v239 = vld [vmem:[%s1 + $0x148] sm:$0xff]
      %v240 = vld [vmem:[%s1 + $0x150] sm:$0xff]
      %v241 = vld [vmem:[%s1 + $0x158] sm:$0xff]
      %v242 = vld [vmem:[%s1 + $0x160] sm:$0xff]
      %v243 = vld [vmem:[%s1 + $0x168] sm:$0xff]
      %v244 = vld [vmem:[%s1 + $0x170] sm:$0xff]
      %v245 = vld [vmem:[%s1 + $0x178] sm:$0xff]
      %v246 = vld [vmem:[%s1 + $0x180] sm:$0xff]
      %v247 = vld [vmem:[%s1 + $0x188] sm:$0xff]
      %v248 = vld [vmem:[%s1 + $0x190] sm:$0xff]
      %v249 = vld [vmem:[%s1 + $0x198] sm:$0xff]
      %v250 = vld [vmem:[%s1 + $0x1a0] sm:$0xff]
      %v251 = vld [vmem:[%s1 + $0x1a8] sm:$0xff]
      %v252 = vld [vmem:[%s1 + $0x1b0] sm:$0xff]
      %v253 = vld [vmem:[%s1 + $0x1b8] sm:$0xff]
      %v254 = vld [vmem:[%s1 + $0x1c0] sm:$0xff]
      %v255 = vld [vmem:[%s1 + $0x1c8] sm:$0xff]
      %v256 = vld [vmem:[%s1 + $0x1d0] sm:$0xff]
      %v257 = vld [vmem:[%s1 + $0x1d8] sm:$0xff]
      %v258 = vld [vmem:[%s1 + $0x1e0] sm:$0xff]
      %v259 = vld [vmem:[%s1 + $0x1e8] sm:$0xff]
      %v260 = vld [vmem:[%s1 + $0x1f0] sm:$0xff]
      %v261 = vld [vmem:[%s1 + $0x1f8] sm:$0xff]
      %v262 = vld [vmem:[%s1 + $0x200] sm:$0xff]
      %v263 = vld [vmem:[%s1 + $0x208] sm:$0xff]
      %v264 = vld [vmem:[%s1 + $0x210] sm:$0xff]
      %v265 = vld [vmem:[%s1 + $0x218] sm:$0xff]
      %v266 = vld [vmem:[%s1 + $0x220] sm:$0xff]
      %v267 = vld [vmem:[%s1 + $0x228] sm:$0xff]
      %v268 = vld [vmem:[%s1 + $0x230] sm:$0xff]
      %v269 = vld [vmem:[%s1 + $0x238] sm:$0xff]
      %v270 = vld [vmem:[%s1 + $0x240] sm:$0xff]
      %v271 = vld [vmem:[%s1 + $0x248] sm:$0xff]
      %v272 = vld [vmem:[%s1 + $0x250] sm:$0xff]
      %v273 = vld [vmem:[%s1 + $0x258] sm:$0xff]
      %v274 = vld [vmem:[%s1 + $0x260] sm:$0xff]
      %v275 = vld [vmem:[%s1 + $0x268] sm:$0xff]
      %v276 = vld [vmem:[%s1 + $0x270] sm:$0xff]
      %v277 = vld [vmem:[%s1 + $0x278] sm:$0xff]
      %v278 = vld [vmem:[%s1 + $0x280] sm:$0xff]
      %v279 = vld [vmem:[%s1 + $0x288] sm:$0xff]
      %v280 = vld [vmem:[%s1 + $0x290] sm:$0xff]
      %v281 = vld [vmem:[%s1 + $0x298] sm:$0xff]
      %v282 = vld [vmem:[%s1 + $0x2a0] sm:$0xff]
      %v283 = vld [vmem:[%s1 + $0x2a8] sm:$0xff]
      %v284 = vld [vmem:[%s1 + $0x2b0] sm:$0xff]
      %v285 = vld [vmem:[%s1 + $0x2b8] sm:$0xff]
      %v286 = vld [vmem:[%s1 + $0x2c0] sm:$0xff]
      %v287 = vld [vmem:[%s1 + $0x2c8] sm:$0xff]
      %v288 = vld [vmem:[%s1 + $0x2d0] sm:$0xff]
      %v289 = vld [vmem:[%s1 + $0x2d8] sm:$0xff]
      %v290 = vld [vmem:[%s1 + $0x2e0] sm:$0xff]
      %v291 = vld [vmem:[%s1 + $0x2e8] sm:$0xff]
      %v292 = vld [vmem:[%s1 + $0x2f0] sm:$0xff]
      %v293 = vld [vmem:[%s1 + $0x2f8] sm:$0xff]
      %v294 = vld [vmem:[%s1 + $0x300] sm:$0xff]
      %v295 = vld [vmem:[%s1 + $0x308] sm:$0xff]
      %v296 = vld [vmem:[%s1 + $0x310] sm:$0xff]
      %v297 = vld [vmem:[%s1 + $0x318] sm:$0xff]
      %v298 = vld [vmem:[%s1 + $0x320] sm:$0xff]
      %v299 = vld [vmem:[%s1 + $0x328] sm:$0xff]
      %v300 = vld [vmem:[%s1 + $0x330] sm:$0xff]
      %v301 = vld [vmem:[%s1 + $0x338] sm:$0xff]
      %v302 = vld [vmem:[%s1 + $0x340] sm:$0xff]
      %v303 = vld [vmem:[%s1 + $0x348] sm:$0xff]
      %v304 = vld [vmem:[%s1 + $0x350] sm:$0xff]
      %v305 = vld [vmem:[%s1 + $0x358] sm:$0xff]
      %v306 = vld [vmem:[%s1 + $0x360] sm:$0xff]
      %v307 = vld [vmem:[%s1 + $0x368] sm:$0xff]
      %v308 = vld [vmem:[%s1 + $0x370] sm:$0xff]
      %v309 = vld [vmem:[%s1 + $0x378] sm:$0xff]
      %v310 = vld [vmem:[%s1 + $0x380] sm:$0xff]
      %v311 = vld [vmem:[%s1 + $0x388] sm:$0xff]
      %v312 = vld [vmem:[%s1 + $0x390] sm:$0xff]
      %v313 = vld [vmem:[%s1 + $0x398] sm:$0xff]
      %v314 = vld [vmem:[%s1 + $0x3a0] sm:$0xff]
      %v315 = vld [vmem:[%s1 + $0x3a8] sm:$0xff]
      %v316 = vld [vmem:[%s1 + $0x3b0] sm:$0xff]
      %v317 = vld [vmem:[%s1 + $0x3b8] sm:$0xff]
      %v318 = vld [vmem:[%s1 + $0x3c0] sm:$0xff]
      %v319 = vld [vmem:[%s1 + $0x3c8] sm:$0xff]
      %v320 = vld [vmem:[%s1 + $0x3d0] sm:$0xff]
      %v321 = vld [vmem:[%s1 + $0x3d8] sm:$0xff]
      %v322 = vld [vmem:[%s1 + $0x3e0] sm:$0xff]
      %v323 = vld [vmem:[%s1 + $0x3e8] sm:$0xff]
      %v324 = vld [vmem:[%s1 + $0x3f0] sm:$0xff]
      %v325 = vld [vmem:[%s1 + $0x3f8] sm:$0xff]
      %v326 = vld [vmem:[%s1 + $0x400] sm:$0xff]
      %v327 = vld [vmem:[%s1 + $0x408] sm:$0xff]
      %v328 = vld [vmem:[%s1 + $0x410] sm:$0xff]
      %v329 = vld [vmem:[%s1 + $0x418] sm:$0xff]
      %v330 = vld [vmem:[%s1 + $0x420] sm:$0xff]
      %v331 = vld [vmem:[%s1 + $0x428] sm:$0xff]
      %v332 = vld [vmem:[%s1 + $0x430] sm:$0xff]
      %v333 = vld [vmem:[%s1 + $0x438] sm:$0xff]
      %v334 = vld [vmem:[%s1 + $0x440] sm:$0xff]
      %v335 = vld [vmem:[%s1 + $0x448] sm:$0xff]
      %v336 = vld [vmem:[%s1 + $0x450] sm:$0xff]
      %v337 = vld [vmem:[%s1 + $0x458] sm:$0xff]
      %v338 = vld [vmem:[%s1 + $0x460] sm:$0xff]
      %v339 = vld [vmem:[%s1 + $0x468] sm:$0xff]
      %v340 = vld [vmem:[%s1 + $0x470] sm:$0xff]
      %v341 = vld [vmem:[%s1 + $0x478] sm:$0xff]
      %v362 = vunpack.c.l.b16 %v178
      %v363 = vunpack.c.h.b16 %v178
      %v364 = vunpack.c.l.b16 %v179
      %v365 = vunpack.c.h.b16 %v179
      %v366 = vunpack.c.l.b16 %v180
      %v367 = vunpack.c.h.b16 %v180
      %v368 = vunpack.c.l.b16 %v181
      %v369 = vunpack.c.h.b16 %v181
      %v370 = vunpack.c.l.b16 %v182
      %v371 = vunpack.c.l.b16 %v183
      %v372 = vunpack.c.h.b16 %v183
      %v373 = vunpack.c.l.b16 %v184
      %v374 = vunpack.c.h.b16 %v184
      %v375 = vunpack.c.l.b16 %v185
      %v376 = vunpack.c.h.b16 %v185
      %v377 = vunpack.c.l.b16 %v186
      %v378 = vunpack.c.h.b16 %v186
      %v379 = vunpack.c.l.b16 %v187
      %v380 = vunpack.c.l.b16 %v188
      %v381 = vunpack.c.h.b16 %v188
      %v382 = vunpack.c.l.b16 %v189
      %v383 = vunpack.c.h.b16 %v189
      %v384 = vunpack.c.l.b16 %v190
      %v385 = vunpack.c.h.b16 %v190
      %v386 = vunpack.c.l.b16 %v191
      %v387 = vunpack.c.h.b16 %v191
      %v388 = vunpack.c.l.b16 %v192
      %v389 = vunpack.c.l.b16 %v193
      %v390 = vunpack.c.h.b16 %v193
      %v391 = vunpack.c.l.b16 %v194
      %v392 = vunpack.c.h.b16 %v194
      %v393 = vunpack.c.l.b16 %v195
      %v394 = vunpack.c.h.b16 %v195
      %v395 = vunpack.c.l.b16 %v196
      %v396 = vunpack.c.h.b16 %v196
      %v397 = vunpack.c.l.b16 %v197
      %v398 = vpack.c.b16 %v371, %v362
      %v399 = vpack.c.b16 %v372, %v363
      %v400 = vpack.c.b16 %v373, %v364
      %v401 = vpack.c.b16 %v374, %v365
      %v402 = vpack.c.b16 %v375, %v366
      %v403 = vpack.c.b16 %v376, %v367
      %v404 = vpack.c.b16 %v377, %v368
      %v405 = vpack.c.b16 %v378, %v369
      %v406 = vpack.c.b16 %v379, %v370
      %v407 = vpack.c.b16 %v389, %v380
      %v408 = vpack.c.b16 %v390, %v381
      %v409 = vpack.c.b16 %v391, %v382
      %v410 = vpack.c.b16 %v392, %v383
      %v411 = vpack.c.b16 %v393, %v384
      %v412 = vpack.c.b16 %v394, %v385
      %v413 = vpack.c.b16 %v395, %v386
      %v414 = vpack.c.b16 %v396, %v387
      %v415 = vpack.c.b16 %v397, %v388
      %v578 = vunpack.c.l.b16 %v198
      %v579 = vunpack.c.h.b16 %v198
      %v580 = vunpack.c.l.b16 %v199
      %v581 = vunpack.c.h.b16 %v199
      %v582 = vunpack.c.l.b16 %v200
      %v583 = vunpack.c.h.b16 %v200
      %v584 = vunpack.c.l.b16 %v201
      %v585 = vunpack.c.h.b16 %v201
      %v586 = vunpack.c.l.b16 %v202
      %v587 = vunpack.c.h.b16 %v202
      %v588 = vunpack.c.l.b16 %v203
      %v589 = vunpack.c.h.b16 %v203
      %v590 = vunpack.c.l.b16 %v204
      %v591 = vunpack.c.h.b16 %v204
      %v592 = vunpack.c.l.b16 %v205
      %v593 = vunpack.c.h.b16 %v205
      %v594 = vunpack.c.l.b16 %v206
      %v595 = vunpack.c.h.b16 %v206
      %v596 = vunpack.c.l.b16 %v207
      %v597 = vunpack.c.h.b16 %v207
      %v598 = vunpack.c.l.b16 %v208
      %v599 = vunpack.c.h.b16 %v208
      %v600 = vunpack.c.l.b16 %v209
      %v601 = vunpack.c.h.b16 %v209
      %v602 = vunpack.c.l.b16 %v210
      %v603 = vunpack.c.h.b16 %v210
      %v604 = vunpack.c.l.b16 %v211
      %v605 = vunpack.c.h.b16 %v211
      %v606 = vunpack.c.l.b16 %v212
      %v607 = vunpack.c.h.b16 %v212
      %v608 = vunpack.c.l.b16 %v213
      %v609 = vunpack.c.h.b16 %v213
      %v610 = vunpack.c.l.b16 %v214
      %v611 = vunpack.c.h.b16 %v214
      %v612 = vunpack.c.l.b16 %v215
      %v613 = vunpack.c.h.b16 %v215
      %v614 = vunpack.c.l.b16 %v216
      %v615 = vunpack.c.h.b16 %v216
      %v616 = vunpack.c.l.b16 %v217
      %v617 = vunpack.c.h.b16 %v217
      %v618 = vunpack.c.l.b16 %v218
      %v619 = vunpack.c.h.b16 %v218
      %v620 = vunpack.c.l.b16 %v219
      %v621 = vunpack.c.h.b16 %v219
      %v622 = vunpack.c.l.b16 %v220
      %v623 = vunpack.c.h.b16 %v220
      %v624 = vunpack.c.l.b16 %v221
      %v625 = vunpack.c.h.b16 %v221
      %v626 = vunpack.c.l.b16 %v222
      %v627 = vunpack.c.h.b16 %v222
      %v628 = vunpack.c.l.b16 %v223
      %v629 = vunpack.c.h.b16 %v223
      %v630 = vunpack.c.l.b16 %v224
      %v631 = vunpack.c.h.b16 %v224
      %v632 = vunpack.c.l.b16 %v225
      %v633 = vunpack.c.h.b16 %v225
      %v634 = vunpack.c.l.b16 %v226
      %v635 = vunpack.c.h.b16 %v226
      %v636 = vunpack.c.l.b16 %v227
      %v637 = vunpack.c.h.b16 %v227
      %v638 = vunpack.c.l.b16 %v228
      %v639 = vunpack.c.h.b16 %v228
      %v640 = vunpack.c.l.b16 %v229
      %v641 = vunpack.c.h.b16 %v229
      %v642 = vunpack.c.l.b16 %v230
      %v643 = vunpack.c.h.b16 %v230
      %v644 = vunpack.c.l.b16 %v231
      %v645 = vunpack.c.h.b16 %v231
      %v646 = vunpack.c.l.b16 %v232
      %v647 = vunpack.c.h.b16 %v232
      %v648 = vunpack.c.l.b16 %v233
      %v649 = vunpack.c.h.b16 %v233
      %v650 = vunpack.c.l.b16 %v234
      %v651 = vunpack.c.h.b16 %v234
      %v652 = vunpack.c.l.b16 %v235
      %v653 = vunpack.c.h.b16 %v235
      %v654 = vunpack.c.l.b16 %v236
      %v655 = vunpack.c.h.b16 %v236
      %v656 = vunpack.c.l.b16 %v237
      %v657 = vunpack.c.h.b16 %v237
      %v658 = vunpack.c.l.b16 %v238
      %v659 = vunpack.c.h.b16 %v238
      %v660 = vunpack.c.l.b16 %v239
      %v661 = vunpack.c.h.b16 %v239
      %v662 = vunpack.c.l.b16 %v240
      %v663 = vunpack.c.h.b16 %v240
      %v664 = vunpack.c.l.b16 %v241
      %v665 = vunpack.c.h.b16 %v241
      %v666 = vunpack.c.l.b16 %v242
      %v667 = vunpack.c.h.b16 %v242
      %v668 = vunpack.c.l.b16 %v243
      %v669 = vunpack.c.h.b16 %v243
      %v670 = vunpack.c.l.b16 %v244
      %v671 = vunpack.c.h.b16 %v244
      %v672 = vunpack.c.l.b16 %v245
      %v673 = vunpack.c.h.b16 %v245
      %v674 = vunpack.c.l.b16 %v246
      %v675 = vunpack.c.h.b16 %v246
      %v676 = vunpack.c.l.b16 %v247
      %v677 = vunpack.c.h.b16 %v247
      %v678 = vunpack.c.l.b16 %v248
      %v679 = vunpack.c.h.b16 %v248
      %v680 = vunpack.c.l.b16 %v249
      %v681 = vunpack.c.h.b16 %v249
      %v682 = vunpack.c.l.b16 %v250
      %v683 = vunpack.c.h.b16 %v250
      %v684 = vunpack.c.l.b16 %v251
      %v685 = vunpack.c.h.b16 %v251
      %v686 = vunpack.c.l.b16 %v252
      %v687 = vunpack.c.h.b16 %v252
      %v688 = vunpack.c.l.b16 %v253
      %v689 = vunpack.c.h.b16 %v253
      %v690 = vunpack.c.l.b16 %v254
      %v691 = vunpack.c.h.b16 %v254
      %v692 = vunpack.c.l.b16 %v255
      %v693 = vunpack.c.h.b16 %v255
      %v694 = vunpack.c.l.b16 %v256
      %v695 = vunpack.c.h.b16 %v256
      %v696 = vunpack.c.l.b16 %v257
      %v697 = vunpack.c.h.b16 %v257
      %v698 = vunpack.c.l.b16 %v258
      %v699 = vunpack.c.h.b16 %v258
      %v700 = vunpack.c.l.b16 %v259
      %v701 = vunpack.c.h.b16 %v259
      %v702 = vunpack.c.l.b16 %v260
      %v703 = vunpack.c.h.b16 %v260
      %v704 = vunpack.c.l.b16 %v261
      %v705 = vunpack.c.h.b16 %v261
      %v706 = vunpack.c.l.b16 %v262
      %v707 = vunpack.c.h.b16 %v262
      %v708 = vunpack.c.l.b16 %v263
      %v709 = vunpack.c.h.b16 %v263
      %v710 = vunpack.c.l.b16 %v264
      %v711 = vunpack.c.h.b16 %v264
      %v712 = vunpack.c.l.b16 %v265
      %v713 = vunpack.c.h.b16 %v265
      %v714 = vunpack.c.l.b16 %v266
      %v715 = vunpack.c.h.b16 %v266
      %v716 = vunpack.c.l.b16 %v267
      %v717 = vunpack.c.h.b16 %v267
      %v718 = vunpack.c.l.b16 %v268
      %v719 = vunpack.c.h.b16 %v268
      %v720 = vunpack.c.l.b16 %v269
      %v721 = vunpack.c.h.b16 %v269
      %v722 = vunpack.c.l.b16 %v270
      %v723 = vunpack.c.h.b16 %v270
      %v724 = vunpack.c.l.b16 %v271
      %v725 = vunpack.c.h.b16 %v271
      %v726 = vunpack.c.l.b16 %v272
      %v727 = vunpack.c.h.b16 %v272
      %v728 = vunpack.c.l.b16 %v273
      %v729 = vunpack.c.h.b16 %v273
      %v730 = vunpack.c.l.b16 %v274
      %v731 = vunpack.c.h.b16 %v274
      %v732 = vunpack.c.l.b16 %v275
      %v733 = vunpack.c.h.b16 %v275
      %v734 = vunpack.c.l.b16 %v276
      %v735 = vunpack.c.h.b16 %v276
      %v736 = vunpack.c.l.b16 %v277
      %v737 = vunpack.c.h.b16 %v277
      %v738 = vunpack.c.l.b16 %v278
      %v739 = vunpack.c.h.b16 %v278
      %v740 = vunpack.c.l.b16 %v279
      %v741 = vunpack.c.h.b16 %v279
      %v742 = vunpack.c.l.b16 %v280
      %v743 = vunpack.c.h.b16 %v280
      %v744 = vunpack.c.l.b16 %v281
      %v745 = vunpack.c.h.b16 %v281
      %v746 = vunpack.c.l.b16 %v282
      %v747 = vunpack.c.h.b16 %v282
      %v748 = vunpack.c.l.b16 %v283
      %v749 = vunpack.c.h.b16 %v283
      %v750 = vunpack.c.l.b16 %v284
      %v751 = vunpack.c.h.b16 %v284
      %v752 = vunpack.c.l.b16 %v285
      %v753 = vunpack.c.h.b16 %v285
      %v754 = vunpack.c.l.b16 %v286
      %v755 = vunpack.c.h.b16 %v286
      %v756 = vunpack.c.l.b16 %v287
      %v757 = vunpack.c.h.b16 %v287
      %v758 = vunpack.c.l.b16 %v288
      %v759 = vunpack.c.h.b16 %v288
      %v760 = vunpack.c.l.b16 %v289
      %v761 = vunpack.c.h.b16 %v289
      %v762 = vunpack.c.l.b16 %v290
      %v763 = vunpack.c.h.b16 %v290
      %v764 = vunpack.c.l.b16 %v291
      %v765 = vunpack.c.h.b16 %v291
      %v766 = vunpack.c.l.b16 %v292
      %v767 = vunpack.c.h.b16 %v292
      %v768 = vunpack.c.l.b16 %v293
      %v769 = vunpack.c.h.b16 %v293
      %v770 = vunpack.c.l.b16 %v294
      %v771 = vunpack.c.h.b16 %v294
      %v772 = vunpack.c.l.b16 %v295
      %v773 = vunpack.c.h.b16 %v295
      %v774 = vunpack.c.l.b16 %v296
      %v775 = vunpack.c.h.b16 %v296
      %v776 = vunpack.c.l.b16 %v297
      %v777 = vunpack.c.h.b16 %v297
      %v778 = vunpack.c.l.b16 %v298
      %v779 = vunpack.c.h.b16 %v298
      %v780 = vunpack.c.l.b16 %v299
      %v781 = vunpack.c.h.b16 %v299
      %v782 = vunpack.c.l.b16 %v300
      %v783 = vunpack.c.h.b16 %v300
      %v784 = vunpack.c.l.b16 %v301
      %v785 = vunpack.c.h.b16 %v301
      %v786 = vunpack.c.l.b16 %v302
      %v787 = vunpack.c.h.b16 %v302
      %v788 = vunpack.c.l.b16 %v303
      %v789 = vunpack.c.h.b16 %v303
      %v790 = vunpack.c.l.b16 %v304
      %v791 = vunpack.c.h.b16 %v304
      %v792 = vunpack.c.l.b16 %v305
      %v793 = vunpack.c.h.b16 %v305
      %v794 = vunpack.c.l.b16 %v306
      %v795 = vunpack.c.h.b16 %v306
      %v796 = vunpack.c.l.b16 %v307
      %v797 = vunpack.c.h.b16 %v307
      %v798 = vunpack.c.l.b16 %v308
      %v799 = vunpack.c.h.b16 %v308
      %v800 = vunpack.c.l.b16 %v309
      %v801 = vunpack.c.h.b16 %v309
      %v802 = vunpack.c.l.b16 %v310
      %v803 = vunpack.c.h.b16 %v310
      %v804 = vunpack.c.l.b16 %v311
      %v805 = vunpack.c.h.b16 %v311
      %v806 = vunpack.c.l.b16 %v312
      %v807 = vunpack.c.h.b16 %v312
      %v808 = vunpack.c.l.b16 %v313
      %v809 = vunpack.c.h.b16 %v313
      %v810 = vunpack.c.l.b16 %v314
      %v811 = vunpack.c.h.b16 %v314
      %v812 = vunpack.c.l.b16 %v315
      %v813 = vunpack.c.h.b16 %v315
      %v814 = vunpack.c.l.b16 %v316
      %v815 = vunpack.c.h.b16 %v316
      %v816 = vunpack.c.l.b16 %v317
      %v817 = vunpack.c.h.b16 %v317
      %v818 = vunpack.c.l.b16 %v318
      %v819 = vunpack.c.h.b16 %v318
      %v820 = vunpack.c.l.b16 %v319
      %v821 = vunpack.c.h.b16 %v319
      %v822 = vunpack.c.l.b16 %v320
      %v823 = vunpack.c.h.b16 %v320
      %v824 = vunpack.c.l.b16 %v321
      %v825 = vunpack.c.h.b16 %v321
      %v826 = vunpack.c.l.b16 %v322
      %v827 = vunpack.c.h.b16 %v322
      %v828 = vunpack.c.l.b16 %v323
      %v829 = vunpack.c.h.b16 %v323
      %v830 = vunpack.c.l.b16 %v324
      %v831 = vunpack.c.h.b16 %v324
      %v832 = vunpack.c.l.b16 %v325
      %v833 = vunpack.c.h.b16 %v325
      %v834 = vunpack.c.l.b16 %v326
      %v835 = vunpack.c.h.b16 %v326
      %v836 = vunpack.c.l.b16 %v327
      %v837 = vunpack.c.h.b16 %v327
      %v838 = vunpack.c.l.b16 %v328
      %v839 = vunpack.c.h.b16 %v328
      %v840 = vunpack.c.l.b16 %v329
      %v841 = vunpack.c.h.b16 %v329
      %v842 = vunpack.c.l.b16 %v330
      %v843 = vunpack.c.h.b16 %v330
      %v844 = vunpack.c.l.b16 %v331
      %v845 = vunpack.c.h.b16 %v331
      %v846 = vunpack.c.l.b16 %v332
      %v847 = vunpack.c.h.b16 %v332
      %v848 = vunpack.c.l.b16 %v333
      %v849 = vunpack.c.h.b16 %v333
      %v850 = vunpack.c.l.b16 %v334
      %v851 = vunpack.c.h.b16 %v334
      %v852 = vunpack.c.l.b16 %v335
      %v853 = vunpack.c.h.b16 %v335
      %v854 = vunpack.c.l.b16 %v336
      %v855 = vunpack.c.h.b16 %v336
      %v856 = vunpack.c.l.b16 %v337
      %v857 = vunpack.c.h.b16 %v337
      %v858 = vunpack.c.l.b16 %v338
      %v859 = vunpack.c.h.b16 %v338
      %v860 = vunpack.c.l.b16 %v339
      %v861 = vunpack.c.h.b16 %v339
      %v862 = vunpack.c.l.b16 %v340
      %v863 = vunpack.c.h.b16 %v340
      %v864 = vunpack.c.l.b16 %v341
      %v865 = vunpack.c.h.b16 %v341
      %v866 = vpack.c.b16 %v580, %v578
      %v867 = vpack.c.b16 %v581, %v579
      %v868 = vpack.c.b16 %v584, %v582
      %v869 = vpack.c.b16 %v585, %v583
      %v870 = vpack.c.b16 %v588, %v586
      %v871 = vpack.c.b16 %v589, %v587
      %v872 = vpack.c.b16 %v592, %v590
      %v873 = vpack.c.b16 %v593, %v591
      %v874 = vpack.c.b16 %v596, %v594
      %v875 = vpack.c.b16 %v597, %v595
      %v876 = vpack.c.b16 %v600, %v598
      %v877 = vpack.c.b16 %v601, %v599
      %v878 = vpack.c.b16 %v604, %v602
      %v879 = vpack.c.b16 %v605, %v603
      %v880 = vpack.c.b16 %v608, %v606
      %v881 = vpack.c.b16 %v609, %v607
      %v882 = vpack.c.b16 %v612, %v610
      %v883 = vpack.c.b16 %v613, %v611
      %v884 = vpack.c.b16 %v616, %v614
      %v885 = vpack.c.b16 %v617, %v615
      %v886 = vpack.c.b16 %v620, %v618
      %v887 = vpack.c.b16 %v621, %v619
      %v888 = vpack.c.b16 %v624, %v622
      %v889 = vpack.c.b16 %v625, %v623
      %v890 = vpack.c.b16 %v628, %v626
      %v891 = vpack.c.b16 %v629, %v627
      %v892 = vpack.c.b16 %v632, %v630
      %v893 = vpack.c.b16 %v633, %v631
      %v894 = vpack.c.b16 %v636, %v634
      %v895 = vpack.c.b16 %v637, %v635
      %v896 = vpack.c.b16 %v640, %v638
      %v897 = vpack.c.b16 %v641, %v639
      %v898 = vpack.c.b16 %v644, %v642
      %v899 = vpack.c.b16 %v645, %v643
      %v900 = vpack.c.b16 %v648, %v646
      %v901 = vpack.c.b16 %v649, %v647
      %v902 = vpack.c.b16 %v652, %v650
      %v903 = vpack.c.b16 %v653, %v651
      %v904 = vpack.c.b16 %v656, %v654
      %v905 = vpack.c.b16 %v657, %v655
      %v906 = vpack.c.b16 %v660, %v658
      %v907 = vpack.c.b16 %v661, %v659
      %v908 = vpack.c.b16 %v664, %v662
      %v909 = vpack.c.b16 %v665, %v663
      %v910 = vpack.c.b16 %v668, %v666
      %v911 = vpack.c.b16 %v669, %v667
      %v912 = vpack.c.b16 %v672, %v670
      %v913 = vpack.c.b16 %v673, %v671
      %v914 = vpack.c.b16 %v676, %v674
      %v915 = vpack.c.b16 %v677, %v675
      %v916 = vpack.c.b16 %v680, %v678
      %v917 = vpack.c.b16 %v681, %v679
      %v918 = vpack.c.b16 %v684, %v682
      %v919 = vpack.c.b16 %v685, %v683
      %v920 = vpack.c.b16 %v688, %v686
      %v921 = vpack.c.b16 %v689, %v687
      %v922 = vpack.c.b16 %v692, %v690
      %v923 = vpack.c.b16 %v693, %v691
      %v924 = vpack.c.b16 %v696, %v694
      %v925 = vpack.c.b16 %v697, %v695
      %v926 = vpack.c.b16 %v700, %v698
      %v927 = vpack.c.b16 %v701, %v699
      %v928 = vpack.c.b16 %v704, %v702
      %v929 = vpack.c.b16 %v705, %v703
      %v930 = vpack.c.b16 %v708, %v706
      %v931 = vpack.c.b16 %v709, %v707
      %v932 = vpack.c.b16 %v712, %v710
      %v933 = vpack.c.b16 %v713, %v711
      %v934 = vpack.c.b16 %v716, %v714
      %v935 = vpack.c.b16 %v717, %v715
      %v936 = vpack.c.b16 %v720, %v718
      %v937 = vpack.c.b16 %v721, %v719
      %v938 = vpack.c.b16 %v724, %v722
      %v939 = vpack.c.b16 %v725, %v723
      %v940 = vpack.c.b16 %v728, %v726
      %v941 = vpack.c.b16 %v729, %v727
      %v942 = vpack.c.b16 %v732, %v730
      %v943 = vpack.c.b16 %v733, %v731
      %v944 = vpack.c.b16 %v736, %v734
      %v945 = vpack.c.b16 %v737, %v735
      %v946 = vpack.c.b16 %v740, %v738
      %v947 = vpack.c.b16 %v741, %v739
      %v948 = vpack.c.b16 %v744, %v742
      %v949 = vpack.c.b16 %v745, %v743
      %v950 = vpack.c.b16 %v748, %v746
      %v951 = vpack.c.b16 %v749, %v747
      %v952 = vpack.c.b16 %v752, %v750
      %v953 = vpack.c.b16 %v753, %v751
      %v954 = vpack.c.b16 %v756, %v754
      %v955 = vpack.c.b16 %v757, %v755
      %v956 = vpack.c.b16 %v760, %v758
      %v957 = vpack.c.b16 %v761, %v759
      %v958 = vpack.c.b16 %v764, %v762
      %v959 = vpack.c.b16 %v765, %v763
      %v960 = vpack.c.b16 %v768, %v766
      %v961 = vpack.c.b16 %v769, %v767
      %v962 = vpack.c.b16 %v772, %v770
      %v963 = vpack.c.b16 %v773, %v771
      %v964 = vpack.c.b16 %v776, %v774
      %v965 = vpack.c.b16 %v777, %v775
      %v966 = vpack.c.b16 %v780, %v778
      %v967 = vpack.c.b16 %v781, %v779
      %v968 = vpack.c.b16 %v784, %v782
      %v969 = vpack.c.b16 %v785, %v783
      %v970 = vpack.c.b16 %v788, %v786
      %v971 = vpack.c.b16 %v789, %v787
      %v972 = vpack.c.b16 %v792, %v790
      %v973 = vpack.c.b16 %v793, %v791
      %v974 = vpack.c.b16 %v796, %v794
      %v975 = vpack.c.b16 %v797, %v795
      %v976 = vpack.c.b16 %v800, %v798
      %v977 = vpack.c.b16 %v801, %v799
      %v978 = vpack.c.b16 %v804, %v802
      %v979 = vpack.c.b16 %v805, %v803
      %v980 = vpack.c.b16 %v808, %v806
      %v981 = vpack.c.b16 %v809, %v807
      %v982 = vpack.c.b16 %v812, %v810
      %v983 = vpack.c.b16 %v813, %v811
      %v984 = vpack.c.b16 %v816, %v814
      %v985 = vpack.c.b16 %v817, %v815
      %v986 = vpack.c.b16 %v820, %v818
      %v987 = vpack.c.b16 %v821, %v819
      %v988 = vpack.c.b16 %v824, %v822
      %v989 = vpack.c.b16 %v825, %v823
      %v990 = vpack.c.b16 %v828, %v826
      %v991 = vpack.c.b16 %v829, %v827
      %v992 = vpack.c.b16 %v832, %v830
      %v993 = vpack.c.b16 %v833, %v831
      %v994 = vpack.c.b16 %v836, %v834
      %v995 = vpack.c.b16 %v837, %v835
      %v996 = vpack.c.b16 %v840, %v838
      %v997 = vpack.c.b16 %v841, %v839
      %v998 = vpack.c.b16 %v844, %v842
      %v999 = vpack.c.b16 %v845, %v843
      %v1000 = vpack.c.b16 %v848, %v846
      %v1001 = vpack.c.b16 %v849, %v847
      %v1002 = vpack.c.b16 %v852, %v850
      %v1003 = vpack.c.b16 %v853, %v851
      %v1004 = vpack.c.b16 %v856, %v854
      %v1005 = vpack.c.b16 %v857, %v855
      %v1006 = vpack.c.b16 %v860, %v858
      %v1007 = vpack.c.b16 %v861, %v859
      %v1008 = vpack.c.b16 %v864, %v862
      %v1009 = vpack.c.b16 %v865, %v863
      %1154 = vmatprep.subr.bf16.mxu0 %v867
      %1155 = vmatpush1.bf16.msra.mxu0 %v866
      %1156 = vmatprep.subr.bf16.mxu0 %v869
      %1157 = vmatpush1.bf16.msra.mxu0 %v868
      %1158 = vmatprep.subr.bf16.mxu0 %v871
      %1159 = vmatpush1.bf16.msra.mxu0 %v870
      %1160 = vmatprep.subr.bf16.mxu0 %v873
      %1161 = vmatpush1.bf16.msra.mxu0 %v872
      %1162 = vmatprep.subr.bf16.mxu0 %v875
      %1163 = vmatpush1.bf16.msra.mxu0 %v874
      %1164 = vmatprep.subr.bf16.mxu0 %v877
      %1165 = vmatpush1.bf16.msra.mxu0 %v876
      %1166 = vmatprep.subr.bf16.mxu0 %v879
      %1167 = vmatpush1.bf16.msra.mxu0 %v878
      %1168 = vmatprep.subr.bf16.mxu0 %v881
      %1169 = vmatpush1.bf16.msra.mxu0 %v880
      %1170 = vmatprep.subr.bf16.mxu0 %v883
      %1171 = vmatpush1.bf16.msra.mxu0 %v882
      %1172 = vmatprep.subr.bf16.mxu0 %v885
      %1173 = vmatpush1.bf16.msra.mxu0 %v884
      %1174 = vmatprep.subr.bf16.mxu0 %v887
      %1175 = vmatpush1.bf16.msra.mxu0 %v886
      %1176 = vmatprep.subr.bf16.mxu0 %v889
      %1177 = vmatpush1.bf16.msra.mxu0 %v888
      %1178 = vmatprep.subr.bf16.mxu0 %v891
      %1179 = vmatpush1.bf16.msra.mxu0 %v890
      %1180 = vmatprep.subr.bf16.mxu0 %v893
      %1181 = vmatpush1.bf16.msra.mxu0 %v892
      %1182 = vmatprep.subr.bf16.mxu0 %v895
      %1183 = vmatpush1.bf16.msra.mxu0 %v894
      %1184 = vmatprep.subr.bf16.mxu0 %v897
      %1185 = vmatpush1.bf16.msra.mxu0 %v896
      %1186 = vmatprep.mubr.bf16.mxu0 %v399
      %1187 = vmatmul.mubr.bf16.gmra.mrb[0].mxu0 %v398
      %v1188 = vpop.f32.mrb[0].mxu0
      %v1189 = vadd.f32 0.0, %v1188
      %v1190 = vpop.f32.mrb[0].mxu0
      %v1191 = vadd.f32 0.0, %v1190
      %v1192 = vpop.f32.mrb[0].mxu0
      %v1193 = vadd.f32 0.0, %v1192
      %v1194 = vpop.f32.mrb[0].mxu0
      %v1195 = vadd.f32 0.0, %v1194
      %1196 = vmatprep.mubr.bf16.mxu0 %v408
      %1197 = vmatmul.mubr.bf16.gmra.mrb[0].mxu0 %v407
      %v1198 = vpop.f32.mrb[0].mxu0
      %v1199 = vadd.f32 0.0, %v1198
      %v1200 = vpop.f32.mrb[0].mxu0
      %v1201 = vadd.f32 0.0, %v1200
      %v1202 = vpop.f32.mrb[0].mxu0
      %v1203 = vadd.f32 0.0, %v1202
      %v1204 = vpop.f32.mrb[0].mxu0
      %v1205 = vadd.f32 0.0, %v1204
      %1206 = vdwg.mxu0
      %1207 = vmatprep.subr.bf16.mxu0 %v899
      %1208 = vmatpush1.bf16.msra.mxu0 %v898
      %1209 = vmatprep.subr.bf16.mxu0 %v901
      %1210 = vmatpush1.bf16.msra.mxu0 %v900
      %1211 = vmatprep.subr.bf16.mxu0 %v903
      %1212 = vmatpush1.bf16.msra.mxu0 %v902
      %1213 = vmatprep.subr.bf16.mxu0 %v905
      %1214 = vmatpush1.bf16.msra.mxu0 %v904
      %1215 = vmatprep.subr.bf16.mxu0 %v907
      %1216 = vmatpush1.bf16.msra.mxu0 %v906
      %1217 = vmatprep.subr.bf16.mxu0 %v909
      %1218 = vmatpush1.bf16.msra.mxu0 %v908
      %1219 = vmatprep.subr.bf16.mxu0 %v911
      %1220 = vmatpush1.bf16.msra.mxu0 %v910
      %1221 = vmatprep.subr.bf16.mxu0 %v913
      %1222 = vmatpush1.bf16.msra.mxu0 %v912
      %1223 = vmatprep.subr.bf16.mxu0 %v915
      %1224 = vmatpush1.bf16.msra.mxu0 %v914
      %1225 = vmatprep.subr.bf16.mxu0 %v917
      %1226 = vmatpush1.bf16.msra.mxu0 %v916
      %1227 = vmatprep.subr.bf16.mxu0 %v919
      %1228 = vmatpush1.bf16.msra.mxu0 %v918
      %1229 = vmatprep.subr.bf16.mxu0 %v921
      %1230 = vmatpush1.bf16.msra.mxu0 %v920
      %1231 = vmatprep.subr.bf16.mxu0 %v923
      %1232 = vmatpush1.bf16.msra.mxu0 %v922
      %1233 = vmatprep.subr.bf16.mxu0 %v925
      %1234 = vmatpush1.bf16.msra.mxu0 %v924
      %1235 = vmatprep.subr.bf16.mxu0 %v927
      %1236 = vmatpush1.bf16.msra.mxu0 %v926
      %1237 = vmatprep.subr.bf16.mxu0 %v929
      %1238 = vmatpush1.bf16.msra.mxu0 %v928
      %1239 = vmatprep.mubr.bf16.mxu0 %v401
      %1240 = vmatmul.mubr.bf16.gmra.mrb[0].mxu0 %v400
      %v1241 = vpop.f32.mrb[0].mxu0
      %v1242 = vadd.f32 %v1189, %v1241
      %v1243 = vpop.f32.mrb[0].mxu0
      %v1244 = vadd.f32 %v1191, %v1243
      %v1245 = vpop.f32.mrb[0].mxu0
      %v1246 = vadd.f32 %v1193, %v1245
      %v1247 = vpop.f32.mrb[0].mxu0
      %v1248 = vadd.f32 %v1195, %v1247
      %1249 = vmatprep.mubr.bf16.mxu0 %v410
      %1250 = vmatmul.mubr.bf16.gmra.mrb[0].mxu0 %v409
      %v1251 = vpop.f32.mrb[0].mxu0
      %v1252 = vadd.f32 %v1199, %v1251
      %v1253 = vpop.f32.mrb[0].mxu0
      %v1254 = vadd.f32 %v1201, %v1253
      %v1255 = vpop.f32.mrb[0].mxu0
      %v1256 = vadd.f32 %v1203, %v1255
      %v1257 = vpop.f32.mrb[0].mxu0
      %v1258 = vadd.f32 %v1205, %v1257
      %1259 = vdwg.mxu0
      %1260 = vmatprep.subr.bf16.mxu0 %v931
      %1261 = vmatpush1.bf16.msra.mxu0 %v930
      %1262 = vmatprep.subr.bf16.mxu0 %v933
      %1263 = vmatpush1.bf16.msra.mxu0 %v932
      %1264 = vmatprep.subr.bf16.mxu0 %v935
      %1265 = vmatpush1.bf16.msra.mxu0 %v934
      %1266 = vmatprep.subr.bf16.mxu0 %v937
      %1267 = vmatpush1.bf16.msra.mxu0 %v936
      %1268 = vmatprep.subr.bf16.mxu0 %v939
      %1269 = vmatpush1.bf16.msra.mxu0 %v938
      %1270 = vmatprep.subr.bf16.mxu0 %v941
      %1271 = vmatpush1.bf16.msra.mxu0 %v940
      %1272 = vmatprep.subr.bf16.mxu0 %v943
      %1273 = vmatpush1.bf16.msra.mxu0 %v942
      %1274 = vmatprep.subr.bf16.mxu0 %v945
      %1275 = vmatpush1.bf16.msra.mxu0 %v944
      %1276 = vmatprep.subr.bf16.mxu0 %v947
      %1277 = vmatpush1.bf16.msra.mxu0 %v946
      %1278 = vmatprep.subr.bf16.mxu0 %v949
      %1279 = vmatpush1.bf16.msra.mxu0 %v948
      %1280 = vmatprep.subr.bf16.mxu0 %v951
      %1281 = vmatpush1.bf16.msra.mxu0 %v950
      %1282 = vmatprep.subr.bf16.mxu0 %v953
      %1283 = vmatpush1.bf16.msra.mxu0 %v952
      %1284 = vmatprep.subr.bf16.mxu0 %v955
      %1285 = vmatpush1.bf16.msra.mxu0 %v954
      %1286 = vmatprep.subr.bf16.mxu0 %v957
      %1287 = vmatpush1.bf16.msra.mxu0 %v956
      %1288 = vmatprep.subr.bf16.mxu0 %v959
      %1289 = vmatpush1.bf16.msra.mxu0 %v958
      %1290 = vmatprep.subr.bf16.mxu0 %v961
      %1291 = vmatpush1.bf16.msra.mxu0 %v960
      %1292 = vmatprep.mubr.bf16.mxu0 %v403
      %1293 = vmatmul.mubr.bf16.gmra.mrb[0].mxu0 %v402
      %v1294 = vpop.f32.mrb[0].mxu0
      %v1295 = vadd.f32 %v1242, %v1294
      %v1296 = vpop.f32.mrb[0].mxu0
      %v1297 = vadd.f32 %v1244, %v1296
      %v1298 = vpop.f32.mrb[0].mxu0
      %v1299 = vadd.f32 %v1246, %v1298
      %v1300 = vpop.f32.mrb[0].mxu0
      %v1301 = vadd.f32 %v1248, %v1300
      %1302 = vmatprep.mubr.bf16.mxu0 %v412
      %1303 = vmatmul.mubr.bf16.gmra.mrb[0].mxu0 %v411
      %v1304 = vpop.f32.mrb[0].mxu0
      %v1305 = vadd.f32 %v1252, %v1304
      %v1306 = vpop.f32.mrb[0].mxu0
      %v1307 = vadd.f32 %v1254, %v1306
      %v1308 = vpop.f32.mrb[0].mxu0
      %v1309 = vadd.f32 %v1256, %v1308
      %v1310 = vpop.f32.mrb[0].mxu0
      %v1311 = vadd.f32 %v1258, %v1310
      %1312 = vdwg.mxu0
      %1313 = vmatprep.subr.bf16.mxu0 %v963
      %1314 = vmatpush1.bf16.msra.mxu0 %v962
      %1315 = vmatprep.subr.bf16.mxu0 %v965
      %1316 = vmatpush1.bf16.msra.mxu0 %v964
      %1317 = vmatprep.subr.bf16.mxu0 %v967
      %1318 = vmatpush1.bf16.msra.mxu0 %v966
      %1319 = vmatprep.subr.bf16.mxu0 %v969
      %1320 = vmatpush1.bf16.msra.mxu0 %v968
      %1321 = vmatprep.subr.bf16.mxu0 %v971
      %1322 = vmatpush1.bf16.msra.mxu0 %v970
      %1323 = vmatprep.subr.bf16.mxu0 %v973
      %1324 = vmatpush1.bf16.msra.mxu0 %v972
      %1325 = vmatprep.subr.bf16.mxu0 %v975
      %1326 = vmatpush1.bf16.msra.mxu0 %v974
      %1327 = vmatprep.subr.bf16.mxu0 %v977
      %1328 = vmatpush1.bf16.msra.mxu0 %v976
      %1329 = vmatprep.subr.bf16.mxu0 %v979
      %1330 = vmatpush1.bf16.msra.mxu0 %v978
      %1331 = vmatprep.subr.bf16.mxu0 %v981
      %1332 = vmatpush1.bf16.msra.mxu0 %v980
      %1333 = vmatprep.subr.bf16.mxu0 %v983
      %1334 = vmatpush1.bf16.msra.mxu0 %v982
      %1335 = vmatprep.subr.bf16.mxu0 %v985
      %1336 = vmatpush1.bf16.msra.mxu0 %v984
      %1337 = vmatprep.subr.bf16.mxu0 %v987
      %1338 = vmatpush1.bf16.msra.mxu0 %v986
      %1339 = vmatprep.subr.bf16.mxu0 %v989
      %1340 = vmatpush1.bf16.msra.mxu0 %v988
      %1341 = vmatprep.subr.bf16.mxu0 %v991
      %1342 = vmatpush1.bf16.msra.mxu0 %v990
      %1343 = vmatprep.subr.bf16.mxu0 %v993
      %1344 = vmatpush1.bf16.msra.mxu0 %v992
      %1345 = vmatprep.mubr.bf16.mxu0 %v405
      %1346 = vmatmul.mubr.bf16.gmra.mrb[0].mxu0 %v404
      %v1347 = vpop.f32.mrb[0].mxu0
      %v1348 = vadd.f32 %v1295, %v1347
      %v1349 = vpop.f32.mrb[0].mxu0
      %v1350 = vadd.f32 %v1297, %v1349
      %v1351 = vpop.f32.mrb[0].mxu0
      %v1352 = vadd.f32 %v1299, %v1351
      %v1353 = vpop.f32.mrb[0].mxu0
      %v1354 = vadd.f32 %v1301, %v1353
      %1355 = vmatprep.mubr.bf16.mxu0 %v414
      %1356 = vmatmul.mubr.bf16.gmra.mrb[0].mxu0 %v413
      %v1357 = vpop.f32.mrb[0].mxu0
      %v1358 = vadd.f32 %v1305, %v1357
      %v1359 = vpop.f32.mrb[0].mxu0
      %v1360 = vadd.f32 %v1307, %v1359
      %v1361 = vpop.f32.mrb[0].mxu0
      %v1362 = vadd.f32 %v1309, %v1361
      %v1363 = vpop.f32.mrb[0].mxu0
      %v1364 = vadd.f32 %v1311, %v1363
      %1365 = vdwg.mxu0
      %1366 = vmatprep.subr.bf16.mxu0 %v995
      %1367 = vmatpush1.bf16.msra.mxu0 %v994
      %1368 = vmatprep.subr.bf16.mxu0 %v997
      %1369 = vmatpush1.bf16.msra.mxu0 %v996
      %1370 = vmatprep.subr.bf16.mxu0 %v999
      %1371 = vmatpush1.bf16.msra.mxu0 %v998
      %1372 = vmatprep.subr.bf16.mxu0 %v1001
      %1373 = vmatpush1.bf16.msra.mxu0 %v1000
      %1374 = vmatprep.subr.bf16.mxu0 %v1003
      %1375 = vmatpush1.bf16.msra.mxu0 %v1002
      %1376 = vmatprep.subr.bf16.mxu0 %v1005
      %1377 = vmatpush1.bf16.msra.mxu0 %v1004
      %1378 = vmatprep.subr.bf16.mxu0 %v1007
      %1379 = vmatpush1.bf16.msra.mxu0 %v1006
      %1380 = vmatprep.subr.bf16.mxu0 %v1009
      %1381 = vmatpush1.bf16.msra.mxu0 %v1008
      %1382 = vmatprep.subr.bf16.mxu0 0
      %1383 = vmatpush1.bf16.msra.mxu0 0
      %1384 = vmatprep.subr.bf16.mxu0 0
      %1385 = vmatpush1.bf16.msra.mxu0 0
      %1386 = vmatprep.subr.bf16.mxu0 0
      %1387 = vmatpush1.bf16.msra.mxu0 0
      %1388 = vmatprep.subr.bf16.mxu0 0
      %1389 = vmatpush1.bf16.msra.mxu0 0
      %1390 = vmatprep.subr.bf16.mxu0 0
      %1391 = vmatpush1.bf16.msra.mxu0 0
      %1392 = vmatprep.subr.bf16.mxu0 0
      %1393 = vmatpush1.bf16.msra.mxu0 0
      %1394 = vmatprep.subr.bf16.mxu0 0
      %1395 = vmatpush1.bf16.msra.mxu0 0
      %1396 = vmatprep.subr.bf16.mxu0 0
      %1397 = vmatpush1.bf16.msra.mxu0 0
      %1398 = vmatprep.mubr.bf16.mxu0 0
      %1399 = vmatmul.mubr.bf16.gmra.mrb[0].mxu0 %v406
      %v1400 = vpop.f32.mrb[0].mxu0
      %v1401 = vadd.f32 %v1348, %v1400
      %v1402 = vpop.f32.mrb[0].mxu0
      %v1403 = vadd.f32 %v1350, %v1402
      %v1404 = vpop.f32.mrb[0].mxu0
      %v1405 = vadd.f32 %v1352, %v1404
      %v1406 = vpop.f32.mrb[0].mxu0
      %v1407 = vadd.f32 %v1354, %v1406
      %1408 = vmatprep.mubr.bf16.mxu0 0
      %1409 = vmatmul.mubr.bf16.gmra.mrb[0].mxu0 %v415
      %v1410 = vpop.f32.mrb[0].mxu0
      %v1411 = vadd.f32 %v1358, %v1410
      %v1412 = vpop.f32.mrb[0].mxu0
      %v1413 = vadd.f32 %v1360, %v1412
      %v1414 = vpop.f32.mrb[0].mxu0
      %v1415 = vadd.f32 %v1362, %v1414
      %v1416 = vpop.f32.mrb[0].mxu0
      %v1417 = vadd.f32 %v1364, %v1416
      %1418 = vdwg.mxu0
      %1423 = vrot.lane.b32.xlu0 %v1401, 64
      %v1424 = vpop.permute.xlu0 %1423
      %1425 = vrot.lane.b32.xlu0 %v1405, 64
      %v1426 = vpop.permute.xlu0 %1425
      %1427 = vrot.lane.b32.xlu0 %v1411, 64
      %v1428 = vpop.permute.xlu0 %1427
      %1429 = vrot.lane.b32.xlu0 %v1415, 64
      %v1430 = vpop.permute.xlu0 %1429
      %v1435 = vmax.f32 %v1401, %v1424
      %v1436 = vmax.f32 %v1405, %v1426
      %v1437 = vmax.f32 %v1411, %v1428
      %v1438 = vmax.f32 %v1415, %v1430
      %1443 = vrot.lane.b32.xlu0 %v1403, 64
      %v1444 = vpop.permute.xlu0 %1443
      %1445 = vrot.lane.b32.xlu0 %v1407, 64
      %v1446 = vpop.permute.xlu0 %1445
      %1447 = vrot.lane.b32.xlu0 %v1413, 64
      %v1448 = vpop.permute.xlu0 %1447
      %1449 = vrot.lane.b32.xlu0 %v1417, 64
      %v1450 = vpop.permute.xlu0 %1449
      %v1455 = vmax.f32 %v1403, %v1444
      %v1456 = vmax.f32 %v1407, %v1446
      %v1457 = vmax.f32 %v1413, %v1448
      %v1458 = vmax.f32 %v1417, %v1450
      %v1459 = vmax.f32 %v1435, %v1455
      %v1460 = vmax.f32 %v1436, %v1456
      %v1461 = vmax.f32 %v1437, %v1457
      %v1462 = vmax.f32 %v1438, %v1458
      %v1463 = vld [vmem:[%s2] sm:$0x1]
      %v1465 = vlaneseq
      %v1466 = vshrl.u32 %v1465, 7
      %v1467 = vsub.s32 0, %v1466
      %v1468 = vrot.slane %v1463, %v1467
      %v1470 = vadd.f32 %v1459, %v1468
      %v1471 = vadd.f32 %v1460, %v1468
      %v1472 = vadd.f32 %v1461, %v1468
      %v1473 = vadd.f32 %v1462, %v1468
      %v1474 = vmax.f32 %v1470, 0.0
      %v1475 = vmax.f32 %v1471, 0.0
      %v1476 = vmax.f32 %v1472, 0.0
      %v1477 = vmax.f32 %v1473, 0.0
      %v1478 = vpack.c.bf16 %v1475, %v1474
      %v1479 = vpack.c.bf16 %v1477, %v1476
      %v1482 = vunpack.c.l.b16 %v1478
      %v1483 = vunpack.c.h.b16 %v1478
      %v1484 = vunpack.c.l.b16 %v1479
      %v1485 = vunpack.c.h.b16 %v1479
      %v1486 = vpack.c.b16 %v1482, %v1482
      %v1487 = vpack.c.b16 %v1483, %v1483
      %v1488 = vpack.c.b16 %v1484, %v1484
      %v1489 = vpack.c.b16 %v1485, %v1485
      %vm1494 = vcmask 519168
      %1495 = vst.msk [vmem:[%s175] sm:$0xf] %vm1494, %v1486
      %1496 = vst.msk [vmem:[%s175 + $0x4] sm:$0xf] %vm1494, %v1487
      %1497 = vst.msk [vmem:[%s175 + $0x8] sm:$0xf] %vm1494, %v1488
      %1498 = vst.msk [vmem:[%s175 + $0xc] sm:$0xf] %vm1494, %v1489
      %s1499 = smul.u32 4, %s14
      %p1500 = scmp.lt.s32.totalorder %s1499, 7
      %s1501 = scalar_select %p1500, %s1499, 7
      %s1502 = smul.addr %s1501, 4
      %s1503 = scalar_lea.vmem %s3, %s1502
      // Predicated region
      $region33: #{net_forward.4} parent=31 // pred_check
        %p1504 = pneg %p100
      $region34: #{net_forward.4} parent=31 // pred_check_branch
        %1506 = sbr.rel (%p1504) target = $region36
      $region35: #{net_forward.4} parent=31 // pred_region
        %s1507 = smul.u32 4, %s14
      $region36: #{net_forward.4} parent=31 // pred_fallthru
        _
    $region32: #{net_forward.4} parent=5 // pred_fallthru
      _
    %p1508 = scmp.le.s32.totalorder 2, %s9
    // Predicated region
    $region37: #{net_forward.4} parent=5 // pred_check
      %p1509 = pneg %p1508
    $region38: #{net_forward.4} parent=5 // pred_check_branch
      %1511 = sbr.rel (%p1509) target = $region40
    $region39: #{net_forward.4} parent=5 // pred_region
      %s1512 = ssub.s32 %s9, 2
      // Predicated region
      $region41: #{net_forward.4} parent=39 // pred_check
        %p1513 = pneg %p106
      $region42: #{net_forward.4} parent=39 // pred_check_branch
        %1515 = sbr.rel (%p1513) target = $region44
      $region43: #{net_forward.4} parent=39 // pred_region
        %s1516 = smul.u32 4, %s15
        %p1517 = scmp.lt.s32.totalorder %s1516, 7
        %s1518 = scalar_select %p1517, %s1516, 7
        %s1519 = smul.addr %s1518, 4
        %s1520 = scalar_lea.vmem %s3, %s1519
      $region44: #{net_forward.4} parent=39 // pred_fallthru
        _
    $region40: #{net_forward.4} parent=5 // pred_fallthru
      _
  $region6: #{net_forward.4} parent=0 // loop_footer
    %s13 = sadd.s32 1, %s9
  $region7: #{net_forward.4} parent=0 // loop_footer_branch
    %8 = sbr.rel target = $region3
  $region8: #{net_forward.4} parent=0 // loop_exit
    _

// kernel: net_forward.5
$region0: #{net_forward.5}
  #allocation0 [shape = 'u32[]', space=smem, size = 0x4, offset = 0x4, fixed_abs, tag = 'smem constant byte address 0x4 - core index']
  #allocation1 [shape = 'u32[144,128]{1,0:T(1,128)}', space=vmem, size = 0x12000, scoped, tag = 'internal scratch']
  %s0 = inlined_call_operand.vmem [shape: bf16[8,1600], index: 0, kind: input, shape index: {}]
  %s1 = inlined_call_operand.vmem [shape: bf16[1600,128], index: 1, kind: input, shape index: {}]
  %s2 = inlined_call_operand.vmem [shape: f32[1,128], index: 2, kind: input, shape index: {}]
  %s3 = inlined_call_operand.vmem [shape: bf16[128,128], index: 3, kind: input, shape index: {}]
  %s4 = inlined_call_operand.vmem [shape: f32[1,128], index: 4, kind: input, shape index: {}]
  %s5 = inlined_call_operand.vmem [shape: f32[8,128], index: 5, kind: output, shape index: {}]
  %s6 = sld [smem:[#allocation0]]
  $region30: #{net_forward.5} parent=0
    _
  %s8 = ssub.s32 1, %s6
  %s9 = scalar_select 0, %s8, %s6
  // Predicated region
  $region2: #{net_forward.5} parent=0 // pred_check
    _
  $region3: #{net_forward.5} parent=0 // pred_check_branch
    %11 = sbr.rel (0) target = $region5
  $region4: #{net_forward.5} parent=0 // pred_region
    _
  $region5: #{net_forward.5} parent=0 // pred_fallthru
    _
  // Predicated region
  $region6: #{net_forward.5} parent=0 // pred_check
    _
  $region7: #{net_forward.5} parent=0 // pred_check_branch
    %13 = sbr.rel (0) target = $region9
  $region8: #{net_forward.5} parent=0 // pred_region
    _
  $region9: #{net_forward.5} parent=0 // pred_fallthru
    _
  // Predicated region
  $region10: #{net_forward.5} parent=0 // pred_check
    _
  $region11: #{net_forward.5} parent=0 // pred_check_branch
    %15 = sbr.rel (0) target = $region13
  $region12: #{net_forward.5} parent=0 // pred_region
    _
  $region13: #{net_forward.5} parent=0 // pred_fallthru
    _
  // Predicated region
  $region14: #{net_forward.5} parent=0 // pred_check
    _
  $region15: #{net_forward.5} parent=0 // pred_check_branch
    %17 = sbr.rel (0) target = $region17
  $region16: #{net_forward.5} parent=0 // pred_region
    _
  $region17: #{net_forward.5} parent=0 // pred_fallthru
    _
  // Predicated region
  $region18: #{net_forward.5} parent=0 // pred_check
    _
  $region19: #{net_forward.5} parent=0 // pred_check_branch
    %19 = sbr.rel (0) target = $region21
  $region20: #{net_forward.5} parent=0 // pred_region
    _
  $region21: #{net_forward.5} parent=0 // pred_fallthru
    _
  %v21 = vld [vmem:[%s0] sm:$0xff]
  %v22 = vld [vmem:[%s0 + $0x8] sm:$0xff]
  %v23 = vld [vmem:[%s0 + $0x10] sm:$0xff]
  %v24 = vld [vmem:[%s0 + $0x18] sm:$0xff]
  %v25 = vld [vmem:[%s0 + $0x20] sm:$0xff]
  %v26 = vld [vmem:[%s0 + $0x28] sm:$0xff]
  %v27 = vld [vmem:[%s0 + $0x30] sm:$0xf]
  %v28 = vld [vmem:[%s1] sm:$0xf]
  %v29 = vld [vmem:[%s1 + $0x4] sm:$0xf]
  %v30 = vld [vmem:[%s1 + $0x8] sm:$0xf]
  %v31 = vld [vmem:[%s1 + $0xc] sm:$0xf]
  %v32 = vld [vmem:[%s1 + $0x10] sm:$0xf]
  %v33 = vld [vmem:[%s1 + $0x14] sm:$0xf]
  %v34 = vld [vmem:[%s1 + $0x18] sm:$0xf]
  %v35 = vld [vmem:[%s1 + $0x1c] sm:$0xf]
  %v36 = vld [vmem:[%s1 + $0x20] sm:$0xf]
  %v37 = vld [vmem:[%s1 + $0x24] sm:$0xf]
  %v38 = vld [vmem:[%s1 + $0x28] sm:$0xf]
  %v39 = vld [vmem:[%s1 + $0x2c] sm:$0xf]
  %v40 = vld [vmem:[%s1 + $0x30] sm:$0xf]
  %v41 = vld [vmem:[%s1 + $0x34] sm:$0xf]
  %v42 = vld [vmem:[%s1 + $0x38] sm:$0xf]
  %v43 = vld [vmem:[%s1 + $0x3c] sm:$0xf]
  %v44 = vld [vmem:[%s1 + $0x40] sm:$0xf]
  %v45 = vld [vmem:[%s1 + $0x44] sm:$0xf]
  %v46 = vld [vmem:[%s1 + $0x48] sm:$0xf]
  %v47 = vld [vmem:[%s1 + $0x4c] sm:$0xf]
  %v48 = vld [vmem:[%s1 + $0x50] sm:$0xf]
  %v49 = vld [vmem:[%s1 + $0x54] sm:$0xf]
  %v50 = vld [vmem:[%s1 + $0x58] sm:$0xf]
  %v51 = vld [vmem:[%s1 + $0x5c] sm:$0xf]
  %v52 = vld [vmem:[%s1 + $0x60] sm:$0xf]
  %v53 = vld [vmem:[%s1 + $0x64] sm:$0xf]
  %v54 = vld [vmem:[%s1 + $0x68] sm:$0xf]
  %v55 = vld [vmem:[%s1 + $0x6c] sm:$0xf]
  %v56 = vld [vmem:[%s1 + $0x70] sm:$0xf]
  %v57 = vld [vmem:[%s1 + $0x74] sm:$0xf]
  %v58 = vld [vmem:[%s1 + $0x78] sm:$0xf]
  %v59 = vld [vmem:[%s1 + $0x7c] sm:$0xf]
  %v60 = vld [vmem:[%s1 + $0x80] sm:$0xf]
  %v61 = vld [vmem:[%s1 + $0x84] sm:$0xf]
  %v62 = vld [vmem:[%s1 + $0x88] sm:$0xf]
  %v63 = vld [vmem:[%s1 + $0x8c] sm:$0xf]
  %v64 = vld [vmem:[%s1 + $0x90] sm:$0xf]
  %v65 = vld [vmem:[%s1 + $0x94] sm:$0xf]
  %v66 = vld [vmem:[%s1 + $0x98] sm:$0xf]
  %v67 = vld [vmem:[%s1 + $0x9c] sm:$0xf]
  %v68 = vld [vmem:[%s1 + $0xa0] sm:$0xf]
  %v69 = vld [vmem:[%s1 + $0xa4] sm:$0xf]
  %v70 = vld [vmem:[%s1 + $0xa8] sm:$0xf]
  %v71 = vld [vmem:[%s1 + $0xac] sm:$0xf]
  %v72 = vld [vmem:[%s1 + $0xb0] sm:$0xf]
  %v73 = vld [vmem:[%s1 + $0xb4] sm:$0xf]
  %v74 = vld [vmem:[%s1 + $0xb8] sm:$0xf]
  %v75 = vld [vmem:[%s1 + $0xbc] sm:$0xf]
  %v76 = vld [vmem:[%s1 + $0xc0] sm:$0xf]
  %v77 = vld [vmem:[%s1 + $0xc4] sm:$0xf]
  %v78 = vld [vmem:[%s1 + $0xc8] sm:$0xf]
  %v79 = vld [vmem:[%s1 + $0xcc] sm:$0xf]
  %v80 = vld [vmem:[%s1 + $0xd0] sm:$0xf]
  %v81 = vld [vmem:[%s1 + $0xd4] sm:$0xf]
  %v82 = vld [vmem:[%s1 + $0xd8] sm:$0xf]
  %v83 = vld [vmem:[%s1 + $0xdc] sm:$0xf]
  %v84 = vld [vmem:[%s1 + $0xe0] sm:$0xf]
  %v85 = vld [vmem:[%s1 + $0xe4] sm:$0xf]
  %v86 = vld [vmem:[%s1 + $0xe8] sm:$0xf]
  %v87 = vld [vmem:[%s1 + $0xec] sm:$0xf]
  %v88 = vld [vmem:[%s1 + $0xf0] sm:$0xf]
  %v89 = vld [vmem:[%s1 + $0xf4] sm:$0xf]
  %v90 = vld [vmem:[%s1 + $0xf8] sm:$0xf]
  %v91 = vld [vmem:[%s1 + $0xfc] sm:$0xf]
  %v92 = vld [vmem:[%s1 + $0x100] sm:$0xf]
  %v93 = vld [vmem:[%s1 + $0x104] sm:$0xf]
  %v94 = vld [vmem:[%s1 + $0x108] sm:$0xf]
  %v95 = vld [vmem:[%s1 + $0x10c] sm:$0xf]
  %v96 = vld [vmem:[%s1 + $0x110] sm:$0xf]
  %v97 = vld [vmem:[%s1 + $0x114] sm:$0xf]
  %v98 = vld [vmem:[%s1 + $0x118] sm:$0xf]
  %v99 = vld [vmem:[%s1 + $0x11c] sm:$0xf]
  %v100 = vld [vmem:[%s1 + $0x120] sm:$0xf]
  %v101 = vld [vmem:[%s1 + $0x124] sm:$0xf]
  %v102 = vld [vmem:[%s1 + $0x128] sm:$0xf]
  %v103 = vld [vmem:[%s1 + $0x12c] sm:$0xf]
  %v104 = vld [vmem:[%s1 + $0x130] sm:$0xf]
  %v105 = vld [vmem:[%s1 + $0x134] sm:$0xf]
  %v106 = vld [vmem:[%s1 + $0x138] sm:$0xf]
  %v107 = vld [vmem:[%s1 + $0x13c] sm:$0xf]
  %v108 = vld [vmem:[%s1 + $0x140] sm:$0xf]
  %v109 = vld [vmem:[%s1 + $0x144] sm:$0xf]
  %v110 = vld [vmem:[%s1 + $0x148] sm:$0xf]
  %v111 = vld [vmem:[%s1 + $0x14c] sm:$0xf]
  %v112 = vld [vmem:[%s1 + $0x150] sm:$0xf]
  %v113 = vld [vmem:[%s1 + $0x154] sm:$0xf]
  %v114 = vld [vmem:[%s1 + $0x158] sm:$0xf]
  %v115 = vld [vmem:[%s1 + $0x15c] sm:$0xf]
  %v116 = vld [vmem:[%s1 + $0x160] sm:$0xf]
  %v117 = vld [vmem:[%s1 + $0x164] sm:$0xf]
  %v118 = vld [vmem:[%s1 + $0x168] sm:$0xf]
  %v119 = vld [vmem:[%s1 + $0x16c] sm:$0xf]
  %v120 = vld [vmem:[%s1 + $0x170] sm:$0xf]
  %v121 = vld [vmem:[%s1 + $0x174] sm:$0xf]
  %v122 = vld [vmem:[%s1 + $0x178] sm:$0xf]
  %v123 = vld [vmem:[%s1 + $0x17c] sm:$0xf]
  %v124 = vld [vmem:[%s1 + $0x180] sm:$0xf]
  %v125 = vld [vmem:[%s1 + $0x184] sm:$0xf]
  %v126 = vld [vmem:[%s1 + $0x188] sm:$0xf]
  %v127 = vld [vmem:[%s1 + $0x18c] sm:$0xf]
  %v128 = vld [vmem:[%s1 + $0x190] sm:$0xf]
  %v129 = vld [vmem:[%s1 + $0x194] sm:$0xf]
  %v130 = vld [vmem:[%s1 + $0x198] sm:$0xf]
  %v131 = vld [vmem:[%s1 + $0x19c] sm:$0xf]
  %v132 = vld [vmem:[%s1 + $0x1a0] sm:$0xf]
  %v133 = vld [vmem:[%s1 + $0x1a4] sm:$0xf]
  %v134 = vld [vmem:[%s1 + $0x1a8] sm:$0xf]
  %v135 = vld [vmem:[%s1 + $0x1ac] sm:$0xf]
  %v136 = vld [vmem:[%s1 + $0x1b0] sm:$0xf]
  %v137 = vld [vmem:[%s1 + $0x1b4] sm:$0xf]
  %v138 = vld [vmem:[%s1 + $0x1b8] sm:$0xf]
  %v139 = vld [vmem:[%s1 + $0x1bc] sm:$0xf]
  %v140 = vld [vmem:[%s1 + $0x1c0] sm:$0xf]
  %v141 = vld [vmem:[%s1 + $0x1c4] sm:$0xf]
  %v142 = vld [vmem:[%s1 + $0x1c8] sm:$0xf]
  %v143 = vld [vmem:[%s1 + $0x1cc] sm:$0xf]
  %v144 = vld [vmem:[%s1 + $0x1d0] sm:$0xf]
  %v145 = vld [vmem:[%s1 + $0x1d4] sm:$0xf]
  %v146 = vld [vmem:[%s1 + $0x1d8] sm:$0xf]
  %v147 = vld [vmem:[%s1 + $0x1dc] sm:$0xf]
  %v148 = vld [vmem:[%s1 + $0x1e0] sm:$0xf]
  %v149 = vld [vmem:[%s1 + $0x1e4] sm:$0xf]
  %v150 = vld [vmem:[%s1 + $0x1e8] sm:$0xf]
  %v151 = vld [vmem:[%s1 + $0x1ec] sm:$0xf]
  %v152 = vld [vmem:[%s1 + $0x1f0] sm:$0xf]
  %v153 = vld [vmem:[%s1 + $0x1f4] sm:$0xf]
  %v154 = vld [vmem:[%s1 + $0x1f8] sm:$0xf]
  %v155 = vld [vmem:[%s1 + $0x1fc] sm:$0xf]
  %v156 = vld [vmem:[%s1 + $0x200] sm:$0xf]
  %v157 = vld [vmem:[%s1 + $0x204] sm:$0xf]
  %v158 = vld [vmem:[%s1 + $0x208] sm:$0xf]
  %v159 = vld [vmem:[%s1 + $0x20c] sm:$0xf]
  %v160 = vld [vmem:[%s1 + $0x210] sm:$0xf]
  %v161 = vld [vmem:[%s1 + $0x214] sm:$0xf]
  %v162 = vld [vmem:[%s1 + $0x218] sm:$0xf]
  %v163 = vld [vmem:[%s1 + $0x21c] sm:$0xf]
  %v164 = vld [vmem:[%s1 + $0x220] sm:$0xf]
  %v165 = vld [vmem:[%s1 + $0x224] sm:$0xf]
  %v166 = vld [vmem:[%s1 + $0x228] sm:$0xf]
  %v167 = vld [vmem:[%s1 + $0x22c] sm:$0xf]
  %v168 = vld [vmem:[%s1 + $0x230] sm:$0xf]
  %v169 = vld [vmem:[%s1 + $0x234] sm:$0xf]
  %v170 = vld [vmem:[%s1 + $0x238] sm:$0xf]
  %v171 = vld [vmem:[%s1 + $0x23c] sm:$0xf]
  %v172 = vld [vmem:[%s1 + $0x240] sm:$0xf]
  %v173 = vld [vmem:[%s1 + $0x244] sm:$0xf]
  %v174 = vld [vmem:[%s1 + $0x248] sm:$0xf]
  %v175 = vld [vmem:[%s1 + $0x24c] sm:$0xf]
  %v176 = vld [vmem:[%s1 + $0x250] sm:$0xf]
  %v177 = vld [vmem:[%s1 + $0x254] sm:$0xf]
  %v178 = vld [vmem:[%s1 + $0x258] sm:$0xf]
  %v179 = vld [vmem:[%s1 + $0x25c] sm:$0xf]
  %v180 = vld [vmem:[%s1 + $0x260] sm:$0xf]
  %v181 = vld [vmem:[%s1 + $0x264] sm:$0xf]
  %v182 = vld [vmem:[%s1 + $0x268] sm:$0xf]
  %v183 = vld [vmem:[%s1 + $0x26c] sm:$0xf]
  %v184 = vld [vmem:[%s1 + $0x270] sm:$0xf]
  %v185 = vld [vmem:[%s1 + $0x274] sm:$0xf]
  %v186 = vld [vmem:[%s1 + $0x278] sm:$0xf]
  %v187 = vld [vmem:[%s1 + $0x27c] sm:$0xf]
  %v188 = vld [vmem:[%s1 + $0x280] sm:$0xf]
  %v189 = vld [vmem:[%s1 + $0x284] sm:$0xf]
  %v190 = vld [vmem:[%s1 + $0x288] sm:$0xf]
  %v191 = vld [vmem:[%s1 + $0x28c] sm:$0xf]
  %v192 = vld [vmem:[%s1 + $0x290] sm:$0xf]
  %v193 = vld [vmem:[%s1 + $0x294] sm:$0xf]
  %v194 = vld [vmem:[%s1 + $0x298] sm:$0xf]
  %v195 = vld [vmem:[%s1 + $0x29c] sm:$0xf]
  %v196 = vld [vmem:[%s1 + $0x2a0] sm:$0xf]
  %v197 = vld [vmem:[%s1 + $0x2a4] sm:$0xf]
  %v198 = vld [vmem:[%s1 + $0x2a8] sm:$0xf]
  %v199 = vld [vmem:[%s1 + $0x2ac] sm:$0xf]
  %v200 = vld [vmem:[%s1 + $0x2b0] sm:$0xf]
  %v201 = vld [vmem:[%s1 + $0x2b4] sm:$0xf]
  %v202 = vld [vmem:[%s1 + $0x2b8] sm:$0xf]
  %v203 = vld [vmem:[%s1 + $0x2bc] sm:$0xf]
  %v204 = vld [vmem:[%s1 + $0x2c0] sm:$0xf]
  %v205 = vld [vmem:[%s1 + $0x2c4] sm:$0xf]
  %v206 = vld [vmem:[%s1 + $0x2c8] sm:$0xf]
  %v207 = vld [vmem:[%s1 + $0x2cc] sm:$0xf]
  %v208 = vld [vmem:[%s1 + $0x2d0] sm:$0xf]
  %v209 = vld [vmem:[%s1 + $0x2d4] sm:$0xf]
  %v210 = vld [vmem:[%s1 + $0x2d8] sm:$0xf]
  %v211 = vld [vmem:[%s1 + $0x2dc] sm:$0xf]
  %v212 = vld [vmem:[%s1 + $0x2e0] sm:$0xf]
  %v213 = vld [vmem:[%s1 + $0x2e4] sm:$0xf]
  %v214 = vld [vmem:[%s1 + $0x2e8] sm:$0xf]
  %v215 = vld [vmem:[%s1 + $0x2ec] sm:$0xf]
  %v216 = vld [vmem:[%s1 + $0x2f0] sm:$0xf]
  %v217 = vld [vmem:[%s1 + $0x2f4] sm:$0xf]
  %v218 = vld [vmem:[%s1 + $0x2f8] sm:$0xf]
  %v219 = vld [vmem:[%s1 + $0x2fc] sm:$0xf]
  %v220 = vld [vmem:[%s1 + $0x300] sm:$0xf]
  %v221 = vld [vmem:[%s1 + $0x304] sm:$0xf]
  %v222 = vld [vmem:[%s1 + $0x308] sm:$0xf]
  %v223 = vld [vmem:[%s1 + $0x30c] sm:$0xf]
  %v224 = vld [vmem:[%s1 + $0x310] sm:$0xf]
  %v225 = vld [vmem:[%s1 + $0x314] sm:$0xf]
  %v226 = vld [vmem:[%s1 + $0x318] sm:$0xf]
  %v227 = vld [vmem:[%s1 + $0x31c] sm:$0xf]
  %v228 = vld [vmem:[%s2] sm:$0x1]
  %v230 = vlaneseq
  %v231 = vshrl.u32 %v230, 7
  %v232 = vsub.s32 0, %v231
  %v233 = vrot.slane %v228, %v232
  %v242 = vunpack.c.l.b16 %v21
  %v243 = vunpack.c.h.b16 %v21
  %v244 = vunpack.c.l.b16 %v22
  %v245 = vunpack.c.h.b16 %v22
  %v246 = vunpack.c.l.b16 %v23
  %v247 = vunpack.c.h.b16 %v23
  %v248 = vunpack.c.l.b16 %v24
  %v249 = vunpack.c.h.b16 %v24
  %v250 = vunpack.c.l.b16 %v25
  %v251 = vunpack.c.h.b16 %v25
  %v252 = vunpack.c.l.b16 %v26
  %v253 = vunpack.c.h.b16 %v26
  %v254 = vunpack.c.l.b16 %v27
  %v255 = vpack.c.b16 %v242, %v242
  %v256 = vpack.c.b16 %v243, %v243
  %v257 = vpack.c.b16 %v244, %v244
  %v258 = vpack.c.b16 %v245, %v245
  %v259 = vpack.c.b16 %v246, %v246
  %v260 = vpack.c.b16 %v247, %v247
  %v261 = vpack.c.b16 %v248, %v248
  %v262 = vpack.c.b16 %v249, %v249
  %v263 = vpack.c.b16 %v250, %v250
  %v264 = vpack.c.b16 %v251, %v251
  %v265 = vpack.c.b16 %v252, %v252
  %v266 = vpack.c.b16 %v253, %v253
  %v267 = vpack.c.b16 %v254, %v254
  %v480 = vunpack.c.l.b16 %v28
  %v481 = vunpack.c.l.b16 %v29
  %v482 = vunpack.c.l.b16 %v30
  %v483 = vunpack.c.l.b16 %v31
  %v484 = vunpack.c.l.b16 %v32
  %v485 = vunpack.c.l.b16 %v33
  %v486 = vunpack.c.l.b16 %v34
  %v487 = vunpack.c.l.b16 %v35
  %v488 = vunpack.c.l.b16 %v36
  %v489 = vunpack.c.l.b16 %v37
  %v490 = vunpack.c.l.b16 %v38
  %v491 = vunpack.c.l.b16 %v39
  %v492 = vunpack.c.l.b16 %v40
  %v493 = vunpack.c.l.b16 %v41
  %v494 = vunpack.c.l.b16 %v42
  %v495 = vunpack.c.l.b16 %v43
  %v496 = vunpack.c.l.b16 %v44
  %v497 = vunpack.c.l.b16 %v45
  %v498 = vunpack.c.l.b16 %v46
  %v499 = vunpack.c.l.b16 %v47
  %v500 = vunpack.c.l.b16 %v48
  %v501 = vunpack.c.l.b16 %v49
  %v502 = vunpack.c.l.b16 %v50
  %v503 = vunpack.c.l.b16 %v51
  %v504 = vunpack.c.l.b16 %v52
  %v505 = vunpack.c.l.b16 %v53
  %v506 = vunpack.c.l.b16 %v54
  %v507 = vunpack.c.l.b16 %v55
  %v508 = vunpack.c.l.b16 %v56
  %v509 = vunpack.c.l.b16 %v57
  %v510 = vunpack.c.l.b16 %v58
  %v511 = vunpack.c.l.b16 %v59
  %v512 = vunpack.c.l.b16 %v60
  %v513 = vunpack.c.l.b16 %v61
  %v514 = vunpack.c.l.b16 %v62
  %v515 = vunpack.c.l.b16 %v63
  %v516 = vunpack.c.l.b16 %v64
  %v517 = vunpack.c.l.b16 %v65
  %v518 = vunpack.c.l.b16 %v66
  %v519 = vunpack.c.l.b16 %v67
  %v520 = vunpack.c.l.b16 %v68
  %v521 = vunpack.c.l.b16 %v69
  %v522 = vunpack.c.l.b16 %v70
  %v523 = vunpack.c.l.b16 %v71
  %v524 = vunpack.c.l.b16 %v72
  %v525 = vunpack.c.l.b16 %v73
  %v526 = vunpack.c.l.b16 %v74
  %v527 = vunpack.c.l.b16 %v75
  %v528 = vunpack.c.l.b16 %v76
  %v529 = vunpack.c.l.b16 %v77
  %v530 = vunpack.c.l.b16 %v78
  %v531 = vunpack.c.l.b16 %v79
  %v532 = vunpack.c.l.b16 %v80
  %v533 = vunpack.c.l.b16 %v81
  %v534 = vunpack.c.l.b16 %v82
  %v535 = vunpack.c.l.b16 %v83
  %v536 = vunpack.c.l.b16 %v84
  %v537 = vunpack.c.l.b16 %v85
  %v538 = vunpack.c.l.b16 %v86
  %v539 = vunpack.c.l.b16 %v87
  %v540 = vunpack.c.l.b16 %v88
  %v541 = vunpack.c.l.b16 %v89
  %v542 = vunpack.c.l.b16 %v90
  %v543 = vunpack.c.l.b16 %v91
  %v544 = vunpack.c.l.b16 %v92
  %v545 = vunpack.c.l.b16 %v93
  %v546 = vunpack.c.l.b16 %v94
  %v547 = vunpack.c.l.b16 %v95
  %v548 = vunpack.c.l.b16 %v96
  %v549 = vunpack.c.l.b16 %v97
  %v550 = vunpack.c.l.b16 %v98
  %v551 = vunpack.c.l.b16 %v99
  %v552 = vunpack.c.l.b16 %v100
  %v553 = vunpack.c.l.b16 %v101
  %v554 = vunpack.c.l.b16 %v102
  %v555 = vunpack.c.l.b16 %v103
  %v556 = vunpack.c.l.b16 %v104
  %v557 = vunpack.c.l.b16 %v105
  %v558 = vunpack.c.l.b16 %v106
  %v559 = vunpack.c.l.b16 %v107
  %v560 = vunpack.c.l.b16 %v108
  %v561 = vunpack.c.l.b16 %v109
  %v562 = vunpack.c.l.b16 %v110
  %v563 = vunpack.c.l.b16 %v111
  %v564 = vunpack.c.l.b16 %v112
  %v565 = vunpack.c.l.b16 %v113
  %v566 = vunpack.c.l.b16 %v114
  %v567 = vunpack.c.l.b16 %v115
  %v568 = vunpack.c.l.b16 %v116
  %v569 = vunpack.c.l.b16 %v117
  %v570 = vunpack.c.l.b16 %v118
  %v571 = vunpack.c.l.b16 %v119
  %v572 = vunpack.c.l.b16 %v120
  %v573 = vunpack.c.l.b16 %v121
  %v574 = vunpack.c.l.b16 %v122
  %v575 = vunpack.c.l.b16 %v123
  %v576 = vunpack.c.l.b16 %v124
  %v577 = vunpack.c.l.b16 %v125
  %v578 = vunpack.c.l.b16 %v126
  %v579 = vunpack.c.l.b16 %v127
  %v580 = vunpack.c.l.b16 %v128
  %v581 = vunpack.c.l.b16 %v129
  %v582 = vunpack.c.l.b16 %v130
  %v583 = vunpack.c.l.b16 %v131
  %v584 = vunpack.c.l.b16 %v132
  %v585 = vunpack.c.l.b16 %v133
  %v586 = vunpack.c.l.b16 %v134
  %v587 = vunpack.c.l.b16 %v135
  %v588 = vunpack.c.l.b16 %v136
  %v589 = vunpack.c.l.b16 %v137
  %v590 = vunpack.c.l.b16 %v138
  %v591 = vunpack.c.l.b16 %v139
  %v592 = vunpack.c.l.b16 %v140
  %v593 = vunpack.c.l.b16 %v141
  %v594 = vunpack.c.l.b16 %v142
  %v595 = vunpack.c.l.b16 %v143
  %v596 = vunpack.c.l.b16 %v144
  %v597 = vunpack.c.l.b16 %v145
  %v598 = vunpack.c.l.b16 %v146
  %v599 = vunpack.c.l.b16 %v147
  %v600 = vunpack.c.l.b16 %v148
  %v601 = vunpack.c.l.b16 %v149
  %v602 = vunpack.c.l.b16 %v150
  %v603 = vunpack.c.l.b16 %v151
  %v604 = vunpack.c.l.b16 %v152
  %v605 = vunpack.c.l.b16 %v153
  %v606 = vunpack.c.l.b16 %v154
  %v607 = vunpack.c.l.b16 %v155
  %v608 = vunpack.c.l.b16 %v156
  %v609 = vunpack.c.l.b16 %v157
  %v610 = vunpack.c.l.b16 %v158
  %v611 = vunpack.c.l.b16 %v159
  %v612 = vunpack.c.l.b16 %v160
  %v613 = vunpack.c.l.b16 %v161
  %v614 = vunpack.c.l.b16 %v162
  %v615 = vunpack.c.l.b16 %v163
  %v616 = vunpack.c.l.b16 %v164
  %v617 = vunpack.c.l.b16 %v165
  %v618 = vunpack.c.l.b16 %v166
  %v619 = vunpack.c.l.b16 %v167
  %v620 = vunpack.c.l.b16 %v168
  %v621 = vunpack.c.l.b16 %v169
  %v622 = vunpack.c.l.b16 %v170
  %v623 = vunpack.c.l.b16 %v171
  %v624 = vunpack.c.l.b16 %v172
  %v625 = vunpack.c.l.b16 %v173
  %v626 = vunpack.c.l.b16 %v174
  %v627 = vunpack.c.l.b16 %v175
  %v628 = vunpack.c.l.b16 %v176
  %v629 = vunpack.c.l.b16 %v177
  %v630 = vunpack.c.l.b16 %v178
  %v631 = vunpack.c.l.b16 %v179
  %v632 = vunpack.c.l.b16 %v180
  %v633 = vunpack.c.l.b16 %v181
  %v634 = vunpack.c.l.b16 %v182
  %v635 = vunpack.c.l.b16 %v183
  %v636 = vunpack.c.l.b16 %v184
  %v637 = vunpack.c.l.b16 %v185
  %v638 = vunpack.c.l.b16 %v186
  %v639 = vunpack.c.l.b16 %v187
  %v640 = vunpack.c.l.b16 %v188
  %v641 = vunpack.c.l.b16 %v189
  %v642 = vunpack.c.l.b16 %v190
  %v643 = vunpack.c.l.b16 %v191
  %v644 = vunpack.c.l.b16 %v192
  %v645 = vunpack.c.l.b16 %v193
  %v646 = vunpack.c.l.b16 %v194
  %v647 = vunpack.c.l.b16 %v195
  %v648 = vunpack.c.l.b16 %v196
  %v649 = vunpack.c.l.b16 %v197
  %v650 = vunpack.c.l.b16 %v198
  %v651 = vunpack.c.l.b16 %v199
  %v652 = vunpack.c.l.b16 %v200
  %v653 = vunpack.c.l.b16 %v201
  %v654 = vunpack.c.l.b16 %v202
  %v655 = vunpack.c.l.b16 %v203
  %v656 = vunpack.c.l.b16 %v204
  %v657 = vunpack.c.l.b16 %v205
  %v658 = vunpack.c.l.b16 %v206
  %v659 = vunpack.c.l.b16 %v207
  %v660 = vunpack.c.l.b16 %v208
  %v661 = vunpack.c.l.b16 %v209
  %v662 = vunpack.c.l.b16 %v210
  %v663 = vunpack.c.l.b16 %v211
  %v664 = vunpack.c.l.b16 %v212
  %v665 = vunpack.c.l.b16 %v213
  %v666 = vunpack.c.l.b16 %v214
  %v667 = vunpack.c.l.b16 %v215
  %v668 = vunpack.c.l.b16 %v216
  %v669 = vunpack.c.l.b16 %v217
  %v670 = vunpack.c.l.b16 %v218
  %v671 = vunpack.c.l.b16 %v219
  %v672 = vunpack.c.l.b16 %v220
  %v673 = vunpack.c.l.b16 %v221
  %v674 = vunpack.c.l.b16 %v222
  %v675 = vunpack.c.l.b16 %v223
  %v676 = vunpack.c.l.b16 %v224
  %v677 = vunpack.c.l.b16 %v225
  %v678 = vunpack.c.l.b16 %v226
  %v679 = vunpack.c.l.b16 %v227
  %v680 = vpack.c.b16 %v481, %v480
  %v681 = vpack.c.b16 %v483, %v482
  %v682 = vpack.c.b16 %v485, %v484
  %v683 = vpack.c.b16 %v487, %v486
  %v684 = vpack.c.b16 %v489, %v488
  %v685 = vpack.c.b16 %v491, %v490
  %v686 = vpack.c.b16 %v493, %v492
  %v687 = vpack.c.b16 %v495, %v494
  %v688 = vpack.c.b16 %v497, %v496
  %v689 = vpack.c.b16 %v499, %v498
  %v690 = vpack.c.b16 %v501, %v500
  %v691 = vpack.c.b16 %v503, %v502
  %v692 = vpack.c.b16 %v505, %v504
  %v693 = vpack.c.b16 %v507, %v506
  %v694 = vpack.c.b16 %v509, %v508
  %v695 = vpack.c.b16 %v511, %v510
  %v696 = vpack.c.b16 %v513, %v512
  %v697 = vpack.c.b16 %v515, %v514
  %v698 = vpack.c.b16 %v517, %v516
  %v699 = vpack.c.b16 %v519, %v518
  %v700 = vpack.c.b16 %v521, %v520
  %v701 = vpack.c.b16 %v523, %v522
  %v702 = vpack.c.b16 %v525, %v524
  %v703 = vpack.c.b16 %v527, %v526
  %v704 = vpack.c.b16 %v529, %v528
  %v705 = vpack.c.b16 %v531, %v530
  %v706 = vpack.c.b16 %v533, %v532
  %v707 = vpack.c.b16 %v535, %v534
  %v708 = vpack.c.b16 %v537, %v536
  %v709 = vpack.c.b16 %v539, %v538
  %v710 = vpack.c.b16 %v541, %v540
  %v711 = vpack.c.b16 %v543, %v542
  %v712 = vpack.c.b16 %v545, %v544
  %v713 = vpack.c.b16 %v547, %v546
  %v714 = vpack.c.b16 %v549, %v548
  %v715 = vpack.c.b16 %v551, %v550
  %v716 = vpack.c.b16 %v553, %v552
  %v717 = vpack.c.b16 %v555, %v554
  %v718 = vpack.c.b16 %v557, %v556
  %v719 = vpack.c.b16 %v559, %v558
  %v720 = vpack.c.b16 %v561, %v560
  %v721 = vpack.c.b16 %v563, %v562
  %v722 = vpack.c.b16 %v565, %v564
  %v723 = vpack.c.b16 %v567, %v566
  %v724 = vpack.c.b16 %v569, %v568
  %v725 = vpack.c.b16 %v571, %v570
  %v726 = vpack.c.b16 %v573, %v572
  %v727 = vpack.c.b16 %v575, %v574
  %v728 = vpack.c.b16 %v577, %v576
  %v729 = vpack.c.b16 %v579, %v578
  %v730 = vpack.c.b16 %v581, %v580
  %v731 = vpack.c.b16 %v583, %v582
  %v732 = vpack.c.b16 %v585, %v584
  %v733 = vpack.c.b16 %v587, %v586
  %v734 = vpack.c.b16 %v589, %v588
  %v735 = vpack.c.b16 %v591, %v590
  %v736 = vpack.c.b16 %v593, %v592
  %v737 = vpack.c.b16 %v595, %v594
  %v738 = vpack.c.b16 %v597, %v596
  %v739 = vpack.c.b16 %v599, %v598
  %v740 = vpack.c.b16 %v601, %v600
  %v741 = vpack.c.b16 %v603, %v602
  %v742 = vpack.c.b16 %v605, %v604
  %v743 = vpack.c.b16 %v607, %v606
  %v744 = vpack.c.b16 %v609, %v608
  %v745 = vpack.c.b16 %v611, %v610
  %v746 = vpack.c.b16 %v613, %v612
  %v747 = vpack.c.b16 %v615, %v614
  %v748 = vpack.c.b16 %v617, %v616
  %v749 = vpack.c.b16 %v619, %v618
  %v750 = vpack.c.b16 %v621, %v620
  %v751 = vpack.c.b16 %v623, %v622
  %v752 = vpack.c.b16 %v625, %v624
  %v753 = vpack.c.b16 %v627, %v626
  %v754 = vpack.c.b16 %v629, %v628
  %v755 = vpack.c.b16 %v631, %v630
  %v756 = vpack.c.b16 %v633, %v632
  %v757 = vpack.c.b16 %v635, %v634
  %v758 = vpack.c.b16 %v637, %v636
  %v759 = vpack.c.b16 %v639, %v638
  %v760 = vpack.c.b16 %v641, %v640
  %v761 = vpack.c.b16 %v643, %v642
  %v762 = vpack.c.b16 %v645, %v644
  %v763 = vpack.c.b16 %v647, %v646
  %v764 = vpack.c.b16 %v649, %v648
  %v765 = vpack.c.b16 %v651, %v650
  %v766 = vpack.c.b16 %v653, %v652
  %v767 = vpack.c.b16 %v655, %v654
  %v768 = vpack.c.b16 %v657, %v656
  %v769 = vpack.c.b16 %v659, %v658
  %v770 = vpack.c.b16 %v661, %v660
  %v771 = vpack.c.b16 %v663, %v662
  %v772 = vpack.c.b16 %v665, %v664
  %v773 = vpack.c.b16 %v667, %v666
  %v774 = vpack.c.b16 %v669, %v668
  %v775 = vpack.c.b16 %v671, %v670
  %v776 = vpack.c.b16 %v673, %v672
  %v777 = vpack.c.b16 %v675, %v674
  %v778 = vpack.c.b16 %v677, %v676
  %v779 = vpack.c.b16 %v679, %v678
  %vm880 = vcmask 523264
  %v882 = vsel %vm880, %v267, 0
  %884 = vmatprep.subr.bf16.mxu0 0
  %885 = vmatpush1.bf16.msra.mxu0 %v680
  %886 = vmatprep.subr.bf16.mxu0 0
  %887 = vmatpush1.bf16.msra.mxu0 %v681
  %888 = vmatprep.subr.bf16.mxu0 0
  %889 = vmatpush1.bf16.msra.mxu0 %v682
  %890 = vmatprep.subr.bf16.mxu0 0
  %891 = vmatpush1.bf16.msra.mxu0 %v683
  %892 = vmatprep.subr.bf16.mxu0 0
  %893 = vmatpush1.bf16.msra.mxu0 %v684
  %894 = vmatprep.subr.bf16.mxu0 0
  %895 = vmatpush1.bf16.msra.mxu0 %v685
  %896 = vmatprep.subr.bf16.mxu0 0
  %897 = vmatpush1.bf16.msra.mxu0 %v686
  %898 = vmatprep.subr.bf16.mxu0 0
  %899 = vmatpush1.bf16.msra.mxu0 %v687
  %900 = vmatprep.subr.bf16.mxu0 0
  %901 = vmatpush1.bf16.msra.mxu0 %v688
  %902 = vmatprep.subr.bf16.mxu0 0
  %903 = vmatpush1.bf16.msra.mxu0 %v689
  %904 = vmatprep.subr.bf16.mxu0 0
  %905 = vmatpush1.bf16.msra.mxu0 %v690
  %906 = vmatprep.subr.bf16.mxu0 0
  %907 = vmatpush1.bf16.msra.mxu0 %v691
  %908 = vmatprep.subr.bf16.mxu0 0
  %909 = vmatpush1.bf16.msra.mxu0 %v692
  %910 = vmatprep.subr.bf16.mxu0 0
  %911 = vmatpush1.bf16.msra.mxu0 %v693
  %912 = vmatprep.subr.bf16.mxu0 0
  %913 = vmatpush1.bf16.msra.mxu0 %v694
  %914 = vmatprep.subr.bf16.mxu0 0
  %915 = vmatpush1.bf16.msra.mxu0 %v695
  %916 = vmatprep.mubr.bf16.mxu0 %v256
  %917 = vmatmul.mubr.bf16.gmra.mrb[0].mxu0 %v255
  %v918 = vpop.f32.mrb[0].mxu0
  %v919 = vadd.f32 %v233, %v918
  %v920 = vpop.f32.mrb[0].mxu0
  %v921 = vpop.f32.mrb[0].mxu0
  %v922 = vpop.f32.mrb[0].mxu0
  %923 = vdwg.mxu0
  %924 = vmatprep.subr.bf16.mxu0 0
  %925 = vmatpush1.bf16.msra.mxu0 %v696
  %926 = vmatprep.subr.bf16.mxu0 0
  %927 = vmatpush1.bf16.msra.mxu0 %v697
  %928 = vmatprep.subr.bf16.mxu0 0
  %929 = vmatpush1.bf16.msra.mxu0 %v698
  %930 = vmatprep.subr.bf16.mxu0 0
  %931 = vmatpush1.bf16.msra.mxu0 %v699
  %932 = vmatprep.subr.bf16.mxu0 0
  %933 = vmatpush1.bf16.msra.mxu0 %v700
  %934 = vmatprep.subr.bf16.mxu0 0
  %935 = vmatpush1.bf16.msra.mxu0 %v701
  %936 = vmatprep.subr.bf16.mxu0 0
  %937 = vmatpush1.bf16.msra.mxu0 %v702
  %938 = vmatprep.subr.bf16.mxu0 0
  %939 = vmatpush1.bf16.msra.mxu0 %v703
  %940 = vmatprep.subr.bf16.mxu0 0
  %941 = vmatpush1.bf16.msra.mxu0 %v704
  %942 = vmatprep.subr.bf16.mxu0 0
  %943 = vmatpush1.bf16.msra.mxu0 %v705
  %944 = vmatprep.subr.bf16.mxu0 0
  %945 = vmatpush1.bf16.msra.mxu0 %v706
  %946 = vmatprep.subr.bf16.mxu0 0
  %947 = vmatpush1.bf16.msra.mxu0 %v707
  %948 = vmatprep.subr.bf16.mxu0 0
  %949 = vmatpush1.bf16.msra.mxu0 %v708
  %950 = vmatprep.subr.bf16.mxu0 0
  %951 = vmatpush1.bf16.msra.mxu0 %v709
  %952 = vmatprep.subr.bf16.mxu0 0
  %953 = vmatpush1.bf16.msra.mxu0 %v710
  %954 = vmatprep.subr.bf16.mxu0 0
  %955 = vmatpush1.bf16.msra.mxu0 %v711
  %956 = vmatprep.mubr.bf16.mxu0 %v258
  %957 = vmatmul.mubr.bf16.gmra.mrb[0].mxu0 %v257
  %v958 = vpop.f32.mrb[0].mxu0
  %v959 = vadd.f32 %v919, %v958
  %v960 = vpop.f32.mrb[0].mxu0
  %v961 = vpop.f32.mrb[0].mxu0
  %v962 = vpop.f32.mrb[0].mxu0
  %963 = vdwg.mxu0
  %964 = vmatprep.subr.bf16.mxu0 0
  %965 = vmatpush1.bf16.msra.mxu0 %v712
  %966 = vmatprep.subr.bf16.mxu0 0
  %967 = vmatpush1.bf16.msra.mxu0 %v713
  %968 = vmatprep.subr.bf16.mxu0 0
  %969 = vmatpush1.bf16.msra.mxu0 %v714
  %970 = vmatprep.subr.bf16.mxu0 0
  %971 = vmatpush1.bf16.msra.mxu0 %v715
  %972 = vmatprep.subr.bf16.mxu0 0
  %973 = vmatpush1.bf16.msra.mxu0 %v716
  %974 = vmatprep.subr.bf16.mxu0 0
  %975 = vmatpush1.bf16.msra.mxu0 %v717
  %976 = vmatprep.subr.bf16.mxu0 0
  %977 = vmatpush1.bf16.msra.mxu0 %v718
  %978 = vmatprep.subr.bf16.mxu0 0
  %979 = vmatpush1.bf16.msra.mxu0 %v719
  %980 = vmatprep.subr.bf16.mxu0 0
  %981 = vmatpush1.bf16.msra.mxu0 %v720
  %982 = vmatprep.subr.bf16.mxu0 0
  %983 = vmatpush1.bf16.msra.mxu0 %v721
  %984 = vmatprep.subr.bf16.mxu0 0
  %985 = vmatpush1.bf16.msra.mxu0 %v722
  %986 = vmatprep.subr.bf16.mxu0 0
  %987 = vmatpush1.bf16.msra.mxu0 %v723
  %988 = vmatprep.subr.bf16.mxu0 0
  %989 = vmatpush1.bf16.msra.mxu0 %v724
  %990 = vmatprep.subr.bf16.mxu0 0
  %991 = vmatpush1.bf16.msra.mxu0 %v725
  %992 = vmatprep.subr.bf16.mxu0 0
  %993 = vmatpush1.bf16.msra.mxu0 %v726
  %994 = vmatprep.subr.bf16.mxu0 0
  %995 = vmatpush1.bf16.msra.mxu0 %v727
  %996 = vmatprep.mubr.bf16.mxu0 %v260
  %997 = vmatmul.mubr.bf16.gmra.mrb[0].mxu0 %v259
  %v998 = vpop.f32.mrb[0].mxu0
  %v999 = vadd.f32 %v959, %v998
  %v1000 = vpop.f32.mrb[0].mxu0
  %v1001 = vpop.f32.mrb[0].mxu0
  %v1002 = vpop.f32.mrb[0].mxu0
  %1003 = vdwg.mxu0
  %1004 = vmatprep.subr.bf16.mxu0 0
  %1005 = vmatpush1.bf16.msra.mxu0 %v728
  %1006 = vmatprep.subr.bf16.mxu0 0
  %1007 = vmatpush1.bf16.msra.mxu0 %v729
  %1008 = vmatprep.subr.bf16.mxu0 0
  %1009 = vmatpush1.bf16.msra.mxu0 %v730
  %1010 = vmatprep.subr.bf16.mxu0 0
  %1011 = vmatpush1.bf16.msra.mxu0 %v731
  %1012 = vmatprep.subr.bf16.mxu0 0
  %1013 = vmatpush1.bf16.msra.mxu0 %v732
  %1014 = vmatprep.subr.bf16.mxu0 0
  %1015 = vmatpush1.bf16.msra.mxu0 %v733
  %1016 = vmatprep.subr.bf16.mxu0 0
  %1017 = vmatpush1.bf16.msra.mxu0 %v734
  %1018 = vmatprep.subr.bf16.mxu0 0
  %1019 = vmatpush1.bf16.msra.mxu0 %v735
  %1020 = vmatprep.subr.bf16.mxu0 0
  %1021 = vmatpush1.bf16.msra.mxu0 %v736
  %1022 = vmatprep.subr.bf16.mxu0 0
  %1023 = vmatpush1.bf16.msra.mxu0 %v737
  %1024 = vmatprep.subr.bf16.mxu0 0
  %1025 = vmatpush1.bf16.msra.mxu0 %v738
  %1026 = vmatprep.subr.bf16.mxu0 0
  %1027 = vmatpush1.bf16.msra.mxu0 %v739
  %1028 = vmatprep.subr.bf16.mxu0 0
  %1029 = vmatpush1.bf16.msra.mxu0 %v740
  %1030 = vmatprep.subr.bf16.mxu0 0
  %1031 = vmatpush1.bf16.msra.mxu0 %v741
  %1032 = vmatprep.subr.bf16.mxu0 0
  %1033 = vmatpush1.bf16.msra.mxu0 %v742
  %1034 = vmatprep.subr.bf16.mxu0 0
  %1035 = vmatpush1.bf16.msra.mxu0 %v743
  %1036 = vmatprep.mubr.bf16.mxu0 %v262
  %1037 = vmatmul.mubr.bf16.gmra.mrb[0].mxu0 %v261
  %v1038 = vpop.f32.mrb[0].mxu0
  %v1039 = vadd.f32 %v999, %v1038
  %v1040 = vpop.f32.mrb[0].mxu0
  %v1041 = vpop.f32.mrb[0].mxu0
  %v1042 = vpop.f32.mrb[0].mxu0
  %1043 = vdwg.mxu0
  %1044 = vmatprep.subr.bf16.mxu0 0
  %1045 = vmatpush1.bf16.msra.mxu0 %v744
  %1046 = vmatprep.subr.bf16.mxu0 0
  %1047 = vmatpush1.bf16.msra.mxu0 %v745
  %1048 = vmatprep.subr.bf16.mxu0 0
  %1049 = vmatpush1.bf16.msra.mxu0 %v746
  %1050 = vmatprep.subr.bf16.mxu0 0
  %1051 = vmatpush1.bf16.msra.mxu0 %v747
  %1052 = vmatprep.subr.bf16.mxu0 0
  %1053 = vmatpush1.bf16.msra.mxu0 %v748
  %1054 = vmatprep.subr.bf16.mxu0 0
  %1055 = vmatpush1.bf16.msra.mxu0 %v749
  %1056 = vmatprep.subr.bf16.mxu0 0
  %1057 = vmatpush1.bf16.msra.mxu0 %v750
  %1058 = vmatprep.subr.bf16.mxu0 0
  %1059 = vmatpush1.bf16.msra.mxu0 %v751
  %1060 = vmatprep.subr.bf16.mxu0 0
  %1061 = vmatpush1.bf16.msra.mxu0 %v752
  %1062 = vmatprep.subr.bf16.mxu0 0
  %1063 = vmatpush1.bf16.msra.mxu0 %v753
  %1064 = vmatprep.subr.bf16.mxu0 0
  %1065 = vmatpush1.bf16.msra.mxu0 %v754
  %1066 = vmatprep.subr.bf16.mxu0 0
  %1067 = vmatpush1.bf16.msra.mxu0 %v755
  %1068 = vmatprep.subr.bf16.mxu0 0
  %1069 = vmatpush1.bf16.msra.mxu0 %v756
  %1070 = vmatprep.subr.bf16.mxu0 0
  %1071 = vmatpush1.bf16.msra.mxu0 %v757
  %1072 = vmatprep.subr.bf16.mxu0 0
  %1073 = vmatpush1.bf16.msra.mxu0 %v758
  %1074 = vmatprep.subr.bf16.mxu0 0
  %1075 = vmatpush1.bf16.msra.mxu0 %v759
  %1076 = vmatprep.mubr.bf16.mxu0 %v264
  %1077 = vmatmul.mubr.bf16.gmra.mrb[0].mxu0 %v263
  %v1078 = vpop.f32.mrb[0].mxu0
  %v1079 = vadd.f32 %v1039, %v1078
  %v1080 = vpop.f32.mrb[0].mxu0
  %v1081 = vpop.f32.mrb[0].mxu0
  %v1082 = vpop.f32.mrb[0].mxu0
  %1083 = vdwg.mxu0
  %1084 = vmatprep.subr.bf16.mxu0 0
  %1085 = vmatpush1.bf16.msra.mxu0 %v760
  %1086 = vmatprep.subr.bf16.mxu0 0
  %1087 = vmatpush1.bf16.msra.mxu0 %v761
  %1088 = vmatprep.subr.bf16.mxu0 0
  %1089 = vmatpush1.bf16.msra.mxu0 %v762
  %1090 = vmatprep.subr.bf16.mxu0 0
  %1091 = vmatpush1.bf16.msra.mxu0 %v763
  %1092 = vmatprep.subr.bf16.mxu0 0
  %1093 = vmatpush1.bf16.msra.mxu0 %v764
  %1094 = vmatprep.subr.bf16.mxu0 0
  %1095 = vmatpush1.bf16.msra.mxu0 %v765
  %1096 = vmatprep.subr.bf16.mxu0 0
  %1097 = vmatpush1.bf16.msra.mxu0 %v766
  %1098 = vmatprep.subr.bf16.mxu0 0
  %1099 = vmatpush1.bf16.msra.mxu0 %v767
  %1100 = vmatprep.subr.bf16.mxu0 0
  %1101 = vmatpush1.bf16.msra.mxu0 %v768
  %1102 = vmatprep.subr.bf16.mxu0 0
  %1103 = vmatpush1.bf16.msra.mxu0 %v769
  %1104 = vmatprep.subr.bf16.mxu0 0
  %1105 = vmatpush1.bf16.msra.mxu0 %v770
  %1106 = vmatprep.subr.bf16.mxu0 0
  %1107 = vmatpush1.bf16.msra.mxu0 %v771
  %1108 = vmatprep.subr.bf16.mxu0 0
  %1109 = vmatpush1.bf16.msra.mxu0 %v772
  %1110 = vmatprep.subr.bf16.mxu0 0
  %1111 = vmatpush1.bf16.msra.mxu0 %v773
  %1112 = vmatprep.subr.bf16.mxu0 0
  %1113 = vmatpush1.bf16.msra.mxu0 %v774
  %1114 = vmatprep.subr.bf16.mxu0 0
  %1115 = vmatpush1.bf16.msra.mxu0 %v775
  %1116 = vmatprep.mubr.bf16.mxu0 %v266
  %1117 = vmatmul.mubr.bf16.gmra.mrb[0].mxu0 %v265
  %v1118 = vpop.f32.mrb[0].mxu0
  %v1119 = vadd.f32 %v1079, %v1118
  %v1120 = vpop.f32.mrb[0].mxu0
  %v1121 = vpop.f32.mrb[0].mxu0
  %v1122 = vpop.f32.mrb[0].mxu0
  %1123 = vdwg.mxu0
  %1124 = vmatprep.subr.bf16.mxu0 0
  %1125 = vmatpush1.bf16.msra.mxu0 %v776
  %1126 = vmatprep.subr.bf16.mxu0 0
  %1127 = vmatpush1.bf16.msra.mxu0 %v777
  %1128 = vmatprep.subr.bf16.mxu0 0
  %1129 = vmatpush1.bf16.msra.mxu0 %v778
  %1130 = vmatprep.subr.bf16.mxu0 0
  %1131 = vmatpush1.bf16.msra.mxu0 %v779
  %1132 = vmatprep.subr.bf16.mxu0 0
  %1133 = vmatpush1.bf16.msra.mxu0 0
  %1134 = vmatprep.subr.bf16.mxu0 0
  %1135 = vmatpush1.bf16.msra.mxu0 0
  %1136 = vmatprep.subr.bf16.mxu0 0
  %1137 = vmatpush1.bf16.msra.mxu0 0
  %1138 = vmatprep.subr.bf16.mxu0 0
  %1139 = vmatpush1.bf16.msra.mxu0 0
  %1140 = vmatprep.subr.bf16.mxu0 0
  %1141 = vmatpush1.bf16.msra.mxu0 0
  %1142 = vmatprep.subr.bf16.mxu0 0
  %1143 = vmatpush1.bf16.msra.mxu0 0
  %1144 = vmatprep.subr.bf16.mxu0 0
  %1145 = vmatpush1.bf16.msra.mxu0 0
  %1146 = vmatprep.subr.bf16.mxu0 0
  %1147 = vmatpush1.bf16.msra.mxu0 0
  %1148 = vmatprep.subr.bf16.mxu0 0
  %1149 = vmatpush1.bf16.msra.mxu0 0
  %1150 = vmatprep.subr.bf16.mxu0 0
  %1151 = vmatpush1.bf16.msra.mxu0 0
  %1152 = vmatprep.subr.bf16.mxu0 0
  %1153 = vmatpush1.bf16.msra.mxu0 0
  %1154 = vmatprep.subr.bf16.mxu0 0
  %1155 = vmatpush1.bf16.msra.mxu0 0
  %1156 = vmatprep.mubr.bf16.mxu0 0
  %1157 = vmatmul.mubr.bf16.gmra.mrb[0].mxu0 %v882
  %v1158 = vpop.f32.mrb[0].mxu0
  %v1159 = vadd.f32 %v1119, %v1158
  %v1160 = vpop.f32.mrb[0].mxu0
  %v1161 = vpop.f32.mrb[0].mxu0
  %v1162 = vpop.f32.mrb[0].mxu0
  %1163 = vdwg.mxu0
  %v1164 = vmax.f32 %v1159, 0.0
  %v1165 = vpack.c.bf16 %v1164, %v1164
  %v1166 = vld [vmem:[%s3] sm:$0xf]
  %v1167 = vld [vmem:[%s3 + $0x4] sm:$0xf]
  %v1168 = vld [vmem:[%s3 + $0x8] sm:$0xf]
  %v1169 = vld [vmem:[%s3 + $0xc] sm:$0xf]
  %v1170 = vld [vmem:[%s3 + $0x10] sm:$0xf]
  %v1171 = vld [vmem:[%s3 + $0x14] sm:$0xf]
  %v1172 = vld [vmem:[%s3 + $0x18] sm:$0xf]
  %v1173 = vld [vmem:[%s3 + $0x1c] sm:$0xf]
  %v1174 = vld [vmem:[%s3 + $0x20] sm:$0xf]
  %v1175 = vld [vmem:[%s3 + $0x24] sm:$0xf]
  %v1176 = vld [vmem:[%s3 + $0x28] sm:$0xf]
  %v1177 = vld [vmem:[%s3 + $0x2c] sm:$0xf]
  %v1178 = vld [vmem:[%s3 + $0x30] sm:$0xf]
  %v1179 = vld [vmem:[%s3 + $0x34] sm:$0xf]
  %v1180 = vld [vmem:[%s3 + $0x38] sm:$0xf]
  %v1181 = vld [vmem:[%s3 + $0x3c] sm:$0xf]
  %v1182 = vld [vmem:[%s4] sm:$0x1]
  %v1184 = vlaneseq
  %v1185 = vshrl.u32 %v1184, 7
  %v1186 = vsub.s32 0, %v1185
  %v1187 = vrot.slane %v1182, %v1186
  %v1205 = vunpack.c.l.b16 %v1166
  %v1206 = vunpack.c.l.b16 %v1167
  %v1207 = vunpack.c.l.b16 %v1168
  %v1208 = vunpack.c.l.b16 %v1169
  %v1209 = vunpack.c.l.b16 %v1170
  %v1210 = vunpack.c.l.b16 %v1171
  %v1211 = vunpack.c.l.b16 %v1172
  %v1212 = vunpack.c.l.b16 %v1173
  %v1213 = vunpack.c.l.b16 %v1174
  %v1214 = vunpack.c.l.b16 %v1175
  %v1215 = vunpack.c.l.b16 %v1176
  %v1216 = vunpack.c.l.b16 %v1177
  %v1217 = vunpack.c.l.b16 %v1178
  %v1218 = vunpack.c.l.b16 %v1179
  %v1219 = vunpack.c.l.b16 %v1180
  %v1220 = vunpack.c.l.b16 %v1181
  %v1221 = vpack.c.b16 %v1206, %v1205
  %v1222 = vpack.c.b16 %v1208, %v1207
  %v1223 = vpack.c.b16 %v1210, %v1209
  %v1224 = vpack.c.b16 %v1212, %v1211
  %v1225 = vpack.c.b16 %v1214, %v1213
  %v1226 = vpack.c.b16 %v1216, %v1215
  %v1227 = vpack.c.b16 %v1218, %v1217
  %v1228 = vpack.c.b16 %v1220, %v1219
  %1237 = vmatprep.subr.bf16.mxu0 0
  %1238 = vmatpush1.bf16.msra.mxu0 %v1221
  %1239 = vmatprep.subr.bf16.mxu0 0
  %1240 = vmatpush1.bf16.msra.mxu0 %v1222
  %1241 = vmatprep.subr.bf16.mxu0 0
  %1242 = vmatpush1.bf16.msra.mxu0 %v1223
  %1243 = vmatprep.subr.bf16.mxu0 0
  %1244 = vmatpush1.bf16.msra.mxu0 %v1224
  %1245 = vmatprep.subr.bf16.mxu0 0
  %1246 = vmatpush1.bf16.msra.mxu0 %v1225
  %1247 = vmatprep.subr.bf16.mxu0 0
  %1248 = vmatpush1.bf16.msra.mxu0 %v1226
  %1249 = vmatprep.subr.bf16.mxu0 0
  %1250 = vmatpush1.bf16.msra.mxu0 %v1227
  %1251 = vmatprep.subr.bf16.mxu0 0
  %1252 = vmatpush1.bf16.msra.mxu0 %v1228
  %1253 = vmatprep.subr.bf16.mxu0 0
  %1254 = vmatpush1.bf16.msra.mxu0 0
  %1255 = vmatprep.subr.bf16.mxu0 0
  %1256 = vmatpush1.bf16.msra.mxu0 0
  %1257 = vmatprep.subr.bf16.mxu0 0
  %1258 = vmatpush1.bf16.msra.mxu0 0
  %1259 = vmatprep.subr.bf16.mxu0 0
  %1260 = vmatpush1.bf16.msra.mxu0 0
  %1261 = vmatprep.subr.bf16.mxu0 0
  %1262 = vmatpush1.bf16.msra.mxu0 0
  %1263 = vmatprep.subr.bf16.mxu0 0
  %1264 = vmatpush1.bf16.msra.mxu0 0
  %1265 = vmatprep.subr.bf16.mxu0 0
  %1266 = vmatpush1.bf16.msra.mxu0 0
  %1267 = vmatprep.subr.bf16.mxu0 0
  %1268 = vmatpush1.bf16.msra.mxu0 0
  %1269 = vmatprep.mubr.bf16.mxu0 0
  %1270 = vmatmul.mubr.bf16.gmra.mrb[0].mxu0 %v1165
  %v1271 = vpop.f32.mrb[0].mxu0
  %v1272 = vadd.f32 %v1187, %v1271
  %v1273 = vpop.f32.mrb[0].mxu0
  %v1274 = vpop.f32.mrb[0].mxu0
  %v1275 = vpop.f32.mrb[0].mxu0
  %1276 = vdwg.mxu0
  %1277 = vmax.xlane.f32.xlu0 %v1272
  %v1278 = vpop.xlane.xlu0 %1277
  %v1279 = vsub.f32 %v1272, %v1278
  %v1280 = vmul.f32 %v1279, 1.442695
  %v1281 = vpow.pop %v1280
  %1282 = vadd.xlane.f32.xlu0 %v1281
  %v1283 = vpop.xlane.xlu0 %1282
  %v1284 = vlog2.pop %v1283
  %v1285 = vmul.f32 %v1284, 0.6931472
  %v1286 = vsub.f32 %v1279, %v1285
  %1287 = vst [vmem:[%s5] sm:$0xff] %v1286
  // Predicated region
  $region22: #{net_forward.5} parent=0 // pred_check
    _
  $region23: #{net_forward.5} parent=0 // pred_check_branch
    %1289 = sbr.rel (0) target = $region25
  $region24: #{net_forward.5} parent=0 // pred_region
    _
  $region25: #{net_forward.5} parent=0 // pred_fallthru
    _
  // Predicated region
  $region26: #{net_forward.5} parent=0 // pred_check
    _
  $region27: #{net_forward.5} parent=0 // pred_check_branch
    %1291 = sbr.rel (0) target = $region29
  $region28: #{net_forward.5} parent=0 // pred_region
    _
  $region29: #{net_forward.5} parent=0 // pred_fallthru
    _

</llo_original>
